<compile_context>
chip_gen: v7x
topology: tpu7x:2x2x1
jax: 0.10.0
libtpu: 0.0.40
codegen_flags: <defaults>
</compile_context>

<pallas_src>
import jax
import jax.numpy as jnp
from jax.experimental import pallas as pl
from jax.experimental.pallas import tpu as pltpu


# --------------------------------------------------------------------------
# Pallas kernels
# --------------------------------------------------------------------------
def _conv_bn_relu_kernel(a_ref, w_ref, scale_ref, bias_ref, o_ref):
    """relu((A @ W) * scale + bias).

    A: (M, K) bf16 im2col patches, W: (K, Cout) bf16, scale/bias: (1, Cout) f32
    (folded conv-bias + eval-mode BatchNorm). Output: (M, Cout) f32.
    """
    acc = jnp.dot(a_ref[...], w_ref[...], preferred_element_type=jnp.float32)
    o_ref[...] = jnp.maximum(acc * scale_ref[...] + bias_ref[...], 0.0)


def _tail_kernel(a_ref, w4_ref, s4_ref, b4_ref,
                 wmu_ref, bmu_ref, wcls_ref, bcls_ref, o_ref):
    """conv4 GEMM + BN + ReLU + mu_fc + class_fc + sigmoid, fused.

    a:    (B, 9*128) bf16  im2col patches of the 4x4x128 feature map
    w4:   (9*128, 256) bf16, s4/b4: (1, 256) f32   (conv4 + BN4 folded)
    wmu:  (256, L) f32, bmu: (1, L) f32            (mu_fc, kept in f32)
    wcls: (1, L) f32,  bcls: (1, 1) f32            (class_fc, Cout=1 -> VPU reduce)
    out:  (B, 1) f32 sigmoid probabilities
    """
    h = jnp.dot(a_ref[...], w4_ref[...], preferred_element_type=jnp.float32)
    h = jnp.maximum(h * s4_ref[...] + b4_ref[...], 0.0)                 # (B, 256)
    mu = jnp.dot(h, wmu_ref[...], preferred_element_type=jnp.float32) + bmu_ref[...]
    logits = jnp.sum(mu * wcls_ref[...], axis=-1, keepdims=True) + bcls_ref[...]
    o_ref[...] = jax.nn.sigmoid(logits)


def conv_bn_relu(patches_bf16, wmat_bf16, scale, bias):
    M = patches_bf16.shape[0]
    N = wmat_bf16.shape[1]
    return pl.pallas_call(
        _conv_bn_relu_kernel,
        out_shape=jax.ShapeDtypeStruct((M, N), jnp.float32),
        in_specs=[pl.BlockSpec(memory_space=pltpu.MemorySpace.VMEM)] * 4,
        out_specs=pl.BlockSpec(memory_space=pltpu.MemorySpace.VMEM),
    )(patches_bf16, wmat_bf16, scale, bias)


def classifier_tail(patches_bf16, w4, s4, b4, wmu, bmu, wcls, bcls):
    B = patches_bf16.shape[0]
    return pl.pallas_call(
        _tail_kernel,
        out_shape=jax.ShapeDtypeStruct((B, 1), jnp.float32),
        in_specs=[pl.BlockSpec(memory_space=pltpu.MemorySpace.VMEM)] * 8,
        out_specs=pl.BlockSpec(memory_space=pltpu.MemorySpace.VMEM),
    )(patches_bf16, w4, s4, b4, wmu, bmu, wcls, bcls)


# --------------------------------------------------------------------------
# im2col glue (plain XLA on tiny tensors)
# --------------------------------------------------------------------------
def im2col_nhwc(x, kh, kw, stride, pad):
    if pad:
        x = jnp.pad(x, ((0, 0), (pad, pad), (pad, pad), (0, 0)))
    N, H, W, C = x.shape
    Ho = (H - kh) // stride + 1
    Wo = (W - kw) // stride + 1
    cols = []
    for i in range(kh):
        for j in range(kw):
            cols.append(x[:, i:i + stride * (Ho - 1) + 1:stride,
                            j:j + stride * (Wo - 1) + 1:stride, :])
    patches = jnp.stack(cols, axis=3)                 # (N, Ho, Wo, kh*kw, C)
    return patches.reshape(N * Ho * Wo, kh * kw * C), (N, Ho, Wo)


# --------------------------------------------------------------------------
# Parameters (deterministic synthetic init; PyTorch tensor shapes preserved)
# --------------------------------------------------------------------------
def init_params(key, latent_size):
    keys = iter(jax.random.split(key, 32))

    def w(shape, fan_in):
        return jax.random.normal(next(keys), shape, jnp.float32) / jnp.sqrt(
            jnp.float32(fan_in))

    def b(shape):
        return jax.random.normal(next(keys), shape, jnp.float32) * 0.01

    p = {}
    # Encoder convs: Conv2d weight (Cout, Cin, 3, 3); BatchNorm2d default init
    # (gamma=1, beta=0, running_mean=0, running_var=1; eval mode).
    for idx, (co, ci) in enumerate([(32, 1), (64, 32), (128, 64), (256, 128)], 1):
        p[f"conv{idx}_w"] = w((co, ci, 3, 3), ci * 9)
        p[f"conv{idx}_b"] = b((co,))
        p[f"bn{idx}_gamma"] = jnp.ones((co,), jnp.float32)
        p[f"bn{idx}_beta"] = jnp.zeros((co,), jnp.float32)
        p[f"bn{idx}_rm"] = jnp.zeros((co,), jnp.float32)
        p[f"bn{idx}_rv"] = jnp.ones((co,), jnp.float32)
    p["mu_w"] = w((latent_size, 256), 256)
    p["mu_b"] = b((latent_size,))
    # log_var_fc exists in the module but its output is discarded by the
    # classifier forward; params kept for structural parity, never used.
    p["lv_w"] = w((latent_size, 256), 256)
    p["lv_b"] = b((latent_size,))
    p["cls_w"] = w((1, latent_size), latent_size)
    p["cls_b"] = b((1,))
    return p


def prepare_params(p, eps=1e-5):
    """One-time prep: fold conv-bias + eval-mode BN into (scale, bias), pre-transpose
    and pre-cast weight matrices so the per-forward graph has no weight reshapes."""
    prep = {}
    for idx in range(1, 5):
        co, ci = p[f"conv{idx}_w"].shape[:2]
        wmat = jnp.transpose(p[f"conv{idx}_w"], (2, 3, 1, 0)).reshape(9 * ci, co)
        scale = p[f"bn{idx}_gamma"] * jax.lax.rsqrt(p[f"bn{idx}_rv"] + eps)
        eff_bias = (p[f"conv{idx}_b"] - p[f"bn{idx}_rm"]) * scale + p[f"bn{idx}_beta"]
        prep[f"w{idx}"] = wmat.astype(jnp.bfloat16)
        prep[f"scale{idx}"] = scale.reshape(1, co).astype(jnp.float32)
        prep[f"bias{idx}"] = eff_bias.reshape(1, co).astype(jnp.float32)
    prep["mu_w"] = p["mu_w"].T.astype(jnp.float32)          # (256, L)
    prep["mu_b"] = p["mu_b"].reshape(1, -1).astype(jnp.float32)
    prep["cls_w"] = p["cls_w"].reshape(1, -1).astype(jnp.float32)   # (1, L)
    prep["cls_b"] = p["cls_b"].reshape(1, 1).astype(jnp.float32)
    return prep


# --------------------------------------------------------------------------
# EyeClassifier forward (mirrors the PyTorch module; encoder in eval mode)
# --------------------------------------------------------------------------
def eye_classifier_forward(prep, x_nchw):
    x = jnp.transpose(x_nchw, (0, 2, 3, 1)).astype(jnp.float32)    # NCHW -> NHWC

    # conv1..conv3: 3x3, pad=1, stride=2, each fused conv+BN(eval)+ReLU kernel
    for idx in (1, 2, 3):
        patches, (N, Ho, Wo) = im2col_nhwc(x, 3, 3, stride=2, pad=1)
        co = prep[f"scale{idx}"].shape[1]
        y = conv_bn_relu(patches.astype(jnp.bfloat16), prep[f"w{idx}"],
                         prep[f"scale{idx}"], prep[f"bias{idx}"])
        x = y.reshape(N, Ho, Wo, co)

    # conv4 (3x3, pad=0, stride=3 -> 1x1x256) + flatten + mu_fc + class_fc +
    # sigmoid, all fused in a single tail kernel.
    patches, _ = im2col_nhwc(x, 3, 3, stride=3, pad=0)             # (B, 1152)
    probs = classifier_tail(patches.astype(jnp.bfloat16),
                            prep["w4"], prep["scale4"], prep["bias4"],
                            prep["mu_w"], prep["mu_b"],
                            prep["cls_w"], prep["cls_b"])          # (B, 1)
    return probs.reshape(-1)                                       # squeeze(-1)


# --------------------------------------------------------------------------
if __name__ == "__main__":
    latent_size = 8
    batch = 2

    root = jax.random.PRNGKey(0)
    k_params, k_input = jax.random.split(root, 2)

    params = init_params(k_params, latent_size)
    prep = prepare_params(params)          # one-time weight prep (outside jit)

    # The conv stack implies 28x28 single-channel images (-> 1x1x256 features).
    x = jax.random.normal(k_input, (batch, 1, 28, 28), jnp.float32)

    fwd = jax.jit(eye_classifier_forward)
    probs = fwd(prep, x)
    jax.block_until_ready(probs)

    assert probs.shape == (batch,), probs.shape
    assert bool(jnp.all(jnp.isfinite(probs)))
    assert bool(jnp.all((probs >= 0.0) & (probs <= 1.0)))   # sigmoid range

    print("KERNEL_OK")
</pallas_src>

<mosaic_0001>
module attributes {stable_mosaic.version = 11 : i64} {
  func.func @_conv_bn_relu_kernel(%arg0: memref<392x9xbf16, #tpu.memory_space<vmem>>, %arg1: memref<9x32xbf16, #tpu.memory_space<vmem>>, %arg2: memref<1x32xf32, #tpu.memory_space<vmem>>, %arg3: memref<1x32xf32, #tpu.memory_space<vmem>>, %arg4: memref<392x32xf32, #tpu.memory_space<vmem>>) attributes {dimension_semantics = [], scalar_prefetch = 0 : i64, scratch_operands = 0 : i64, tpu.core_type = #tpu.core_type<tc>} {
    %c0 = arith.constant 0 : index
    %c0_0 = arith.constant 0 : index
    %0 = vector.load %arg0[%c0, %c0_0] : memref<392x9xbf16, #tpu.memory_space<vmem>>, vector<392x9xbf16>
    %c0_1 = arith.constant 0 : index
    %c0_2 = arith.constant 0 : index
    %1 = vector.load %arg1[%c0_1, %c0_2] : memref<9x32xbf16, #tpu.memory_space<vmem>>, vector<9x32xbf16>
    %cst = arith.constant dense<0.000000e+00> : vector<392x32xf32>
    %2 = tpu.matmul %0, %1, %cst {dimension_numbers = #tpu.dot_dimension_numbers<[1], [0], [0], [1], [0, 0, 1, 1], [], []>} : vector<392x9xbf16>, vector<9x32xbf16>, vector<392x32xf32> -> vector<392x32xf32>
    %c0_3 = arith.constant 0 : index
    %c0_4 = arith.constant 0 : index
    %3 = vector.load %arg2[%c0_3, %c0_4] : memref<1x32xf32, #tpu.memory_space<vmem>>, vector<1x32xf32>
    %4 = vector.broadcast %3 : vector<1x32xf32> to vector<392x32xf32>
    %5 = arith.mulf %2, %4 : vector<392x32xf32>
    %c0_5 = arith.constant 0 : index
    %c0_6 = arith.constant 0 : index
    %6 = vector.load %arg3[%c0_5, %c0_6] : memref<1x32xf32, #tpu.memory_space<vmem>>, vector<1x32xf32>
    %7 = vector.broadcast %6 : vector<1x32xf32> to vector<392x32xf32>
    %8 = arith.addf %5, %7 : vector<392x32xf32>
    %cst_7 = arith.constant 0.000000e+00 : f32
    %9 = vector.broadcast %cst_7 : f32 to vector<392x32xf32>
    %10 = arith.maximumf %8, %9 : vector<392x32xf32>
    %c0_8 = arith.constant 0 : index
    %c0_9 = arith.constant 0 : index
    %11 = vector.load %arg4[%c0_8, %c0_9] : memref<392x32xf32, #tpu.memory_space<vmem>>, vector<392x32xf32>
    tpu.vector_store %arg4[%c0_8, %c0_9], %10 {strides = array<i32>} : memref<392x32xf32, #tpu.memory_space<vmem>>, vector<392x32xf32>,
    return
  }
}

module attributes {stable_mosaic.version = 11 : i64} {
  func.func @_conv_bn_relu_kernel(%arg0: memref<98x288xbf16, #tpu.memory_space<vmem>>, %arg1: memref<288x64xbf16, #tpu.memory_space<vmem>>, %arg2: memref<1x64xf32, #tpu.memory_space<vmem>>, %arg3: memref<1x64xf32, #tpu.memory_space<vmem>>, %arg4: memref<98x64xf32, #tpu.memory_space<vmem>>) attributes {dimension_semantics = [], scalar_prefetch = 0 : i64, scratch_operands = 0 : i64, tpu.core_type = #tpu.core_type<tc>} {
    %c0 = arith.constant 0 : index
    %c0_0 = arith.constant 0 : index
    %0 = vector.load %arg0[%c0, %c0_0] : memref<98x288xbf16, #tpu.memory_space<vmem>>, vector<98x288xbf16>
    %c0_1 = arith.constant 0 : index
    %c0_2 = arith.constant 0 : index
    %1 = vector.load %arg1[%c0_1, %c0_2] : memref<288x64xbf16, #tpu.memory_space<vmem>>, vector<288x64xbf16>
    %cst = arith.constant dense<0.000000e+00> : vector<98x64xf32>
    %2 = tpu.matmul %0, %1, %cst {dimension_numbers = #tpu.dot_dimension_numbers<[1], [0], [0], [1], [0, 0, 1, 1], [], []>} : vector<98x288xbf16>, vector<288x64xbf16>, vector<98x64xf32> -> vector<98x64xf32>
    %c0_3 = arith.constant 0 : index
    %c0_4 = arith.constant 0 : index
    %3 = vector.load %arg2[%c0_3, %c0_4] : memref<1x64xf32, #tpu.memory_space<vmem>>, vector<1x64xf32>
    %4 = vector.broadcast %3 : vector<1x64xf32> to vector<98x64xf32>
    %5 = arith.mulf %2, %4 : vector<98x64xf32>
    %c0_5 = arith.constant 0 : index
    %c0_6 = arith.constant 0 : index
    %6 = vector.load %arg3[%c0_5, %c0_6] : memref<1x64xf32, #tpu.memory_space<vmem>>, vector<1x64xf32>
    %7 = vector.broadcast %6 : vector<1x64xf32> to vector<98x64xf32>
    %8 = arith.addf %5, %7 : vector<98x64xf32>
    %cst_7 = arith.constant 0.000000e+00 : f32
    %9 = vector.broadcast %cst_7 : f32 to vector<98x64xf32>
    %10 = arith.maximumf %8, %9 : vector<98x64xf32>
    %c0_8 = arith.constant 0 : index
    %c0_9 = arith.constant 0 : index
    %11 = vector.load %arg4[%c0_8, %c0_9] : memref<98x64xf32, #tpu.memory_space<vmem>>, vector<98x64xf32>
    tpu.vector_store %arg4[%c0_8, %c0_9], %10 {strides = array<i32>} : memref<98x64xf32, #tpu.memory_space<vmem>>, vector<98x64xf32>,
    return
  }
}

module attributes {stable_mosaic.version = 11 : i64} {
  func.func @_conv_bn_relu_kernel(%arg0: memref<32x576xbf16, #tpu.memory_space<vmem>>, %arg1: memref<576x128xbf16, #tpu.memory_space<vmem>>, %arg2: memref<1x128xf32, #tpu.memory_space<vmem>>, %arg3: memref<1x128xf32, #tpu.memory_space<vmem>>, %arg4: memref<32x128xf32, #tpu.memory_space<vmem>>) attributes {dimension_semantics = [], scalar_prefetch = 0 : i64, scratch_operands = 0 : i64, tpu.core_type = #tpu.core_type<tc>} {
    %c0 = arith.constant 0 : index
    %c0_0 = arith.constant 0 : index
    %0 = vector.load %arg0[%c0, %c0_0] : memref<32x576xbf16, #tpu.memory_space<vmem>>, vector<32x576xbf16>
    %c0_1 = arith.constant 0 : index
    %c0_2 = arith.constant 0 : index
    %1 = vector.load %arg1[%c0_1, %c0_2] : memref<576x128xbf16, #tpu.memory_space<vmem>>, vector<576x128xbf16>
    %cst = arith.constant dense<0.000000e+00> : vector<32x128xf32>
    %2 = tpu.matmul %0, %1, %cst {dimension_numbers = #tpu.dot_dimension_numbers<[1], [0], [0], [1], [0, 0, 1, 1], [], []>} : vector<32x576xbf16>, vector<576x128xbf16>, vector<32x128xf32> -> vector<32x128xf32>
    %c0_3 = arith.constant 0 : index
    %c0_4 = arith.constant 0 : index
    %3 = vector.load %arg2[%c0_3, %c0_4] : memref<1x128xf32, #tpu.memory_space<vmem>>, vector<1x128xf32>
    %4 = vector.broadcast %3 : vector<1x128xf32> to vector<32x128xf32>
    %5 = arith.mulf %2, %4 : vector<32x128xf32>
    %c0_5 = arith.constant 0 : index
    %c0_6 = arith.constant 0 : index
    %6 = vector.load %arg3[%c0_5, %c0_6] : memref<1x128xf32, #tpu.memory_space<vmem>>, vector<1x128xf32>
    %7 = vector.broadcast %6 : vector<1x128xf32> to vector<32x128xf32>
    %8 = arith.addf %5, %7 : vector<32x128xf32>
    %cst_7 = arith.constant 0.000000e+00 : f32
    %9 = vector.broadcast %cst_7 : f32 to vector<32x128xf32>
    %10 = arith.maximumf %8, %9 : vector<32x128xf32>
    %c0_8 = arith.constant 0 : index
    %c0_9 = arith.constant 0 : index
    %11 = vector.load %arg4[%c0_8, %c0_9] : memref<32x128xf32, #tpu.memory_space<vmem>>, vector<32x128xf32>
    tpu.vector_store %arg4[%c0_8, %c0_9], %10 {strides = array<i32>} : memref<32x128xf32, #tpu.memory_space<vmem>>, vector<32x128xf32>,
    return
  }
}

module attributes {stable_mosaic.version = 11 : i64} {
  func.func @_tail_kernel(%arg0: memref<2x1152xbf16, #tpu.memory_space<vmem>>, %arg1: memref<1152x256xbf16, #tpu.memory_space<vmem>>, %arg2: memref<1x256xf32, #tpu.memory_space<vmem>>, %arg3: memref<1x256xf32, #tpu.memory_space<vmem>>, %arg4: memref<256x8xf32, #tpu.memory_space<vmem>>, %arg5: memref<1x8xf32, #tpu.memory_space<vmem>>, %arg6: memref<1x8xf32, #tpu.memory_space<vmem>>, %arg7: memref<1x1xf32, #tpu.memory_space<vmem>>, %arg8: memref<2x1xf32, #tpu.memory_space<vmem>>) attributes {dimension_semantics = [], scalar_prefetch = 0 : i64, scratch_operands = 0 : i64, tpu.core_type = #tpu.core_type<tc>} {
    %c0 = arith.constant 0 : index
    %c0_0 = arith.constant 0 : index
    %0 = vector.load %arg0[%c0, %c0_0] : memref<2x1152xbf16, #tpu.memory_space<vmem>>, vector<2x1152xbf16>
    %c0_1 = arith.constant 0 : index
    %c0_2 = arith.constant 0 : index
    %1 = vector.load %arg1[%c0_1, %c0_2] : memref<1152x256xbf16, #tpu.memory_space<vmem>>, vector<1152x256xbf16>
    %cst = arith.constant dense<0.000000e+00> : vector<2x256xf32>
    %2 = tpu.matmul %0, %1, %cst {dimension_numbers = #tpu.dot_dimension_numbers<[1], [0], [0], [1], [0, 0, 1, 1], [], []>} : vector<2x1152xbf16>, vector<1152x256xbf16>, vector<2x256xf32> -> vector<2x256xf32>
    %c0_3 = arith.constant 0 : index
    %c0_4 = arith.constant 0 : index
    %3 = vector.load %arg2[%c0_3, %c0_4] : memref<1x256xf32, #tpu.memory_space<vmem>>, vector<1x256xf32>
    %4 = vector.broadcast %3 : vector<1x256xf32> to vector<2x256xf32>
    %5 = arith.mulf %2, %4 : vector<2x256xf32>
    %c0_5 = arith.constant 0 : index
    %c0_6 = arith.constant 0 : index
    %6 = vector.load %arg3[%c0_5, %c0_6] : memref<1x256xf32, #tpu.memory_space<vmem>>, vector<1x256xf32>
    %7 = vector.broadcast %6 : vector<1x256xf32> to vector<2x256xf32>
    %8 = arith.addf %5, %7 : vector<2x256xf32>
    %cst_7 = arith.constant 0.000000e+00 : f32
    %9 = vector.broadcast %cst_7 : f32 to vector<2x256xf32>
    %10 = arith.maximumf %8, %9 : vector<2x256xf32>
    %c0_8 = arith.constant 0 : index
    %c0_9 = arith.constant 0 : index
    %11 = vector.load %arg4[%c0_8, %c0_9] : memref<256x8xf32, #tpu.memory_space<vmem>>, vector<256x8xf32>
    %cst_10 = arith.constant dense<0.000000e+00> : vector<2x8xf32>
    %12 = tpu.matmul %10, %11, %cst_10 {dimension_numbers = #tpu.dot_dimension_numbers<[1], [0], [0], [1], [0, 0, 1, 1], [], []>} : vector<2x256xf32>, vector<256x8xf32>, vector<2x8xf32> -> vector<2x8xf32>
    %c0_11 = arith.constant 0 : index
    %c0_12 = arith.constant 0 : index
    %13 = vector.load %arg5[%c0_11, %c0_12] : memref<1x8xf32, #tpu.memory_space<vmem>>, vector<1x8xf32>
    %14 = vector.broadcast %13 : vector<1x8xf32> to vector<2x8xf32>
    %15 = arith.addf %12, %14 : vector<2x8xf32>
    %c0_13 = arith.constant 0 : index
    %c0_14 = arith.constant 0 : index
    %16 = vector.load %arg6[%c0_13, %c0_14] : memref<1x8xf32, #tpu.memory_space<vmem>>, vector<1x8xf32>
    %17 = vector.broadcast %16 : vector<1x8xf32> to vector<2x8xf32>
    %18 = arith.mulf %15, %17 : vector<2x8xf32>
    %cst_15 = arith.constant dense<0.000000e+00> : vector<2xf32>
    %19 = vector.multi_reduction <add>, %18, %cst_15 [1] : vector<2x8xf32> to vector<2xf32>
    %20 = vector.shape_cast %19 : vector<2xf32> to vector<2x1xf32>
    %c0_16 = arith.constant 0 : index
    %c0_17 = arith.constant 0 : index
    %21 = vector.load %arg7[%c0_16, %c0_17] : memref<1x1xf32, #tpu.memory_space<vmem>>, vector<1x1xf32>
    %22 = vector.broadcast %21 : vector<1x1xf32> to vector<2x1xf32>
    %23 = arith.addf %20, %22 : vector<2x1xf32>
    %24 = arith.negf %23 : vector<2x1xf32>
    %25 = math.exp %24 : vector<2x1xf32>
    %cst_18 = arith.constant 1.000000e+00 : f32
    %26 = vector.broadcast %cst_18 : f32 to vector<2x1xf32>
    %27 = arith.addf %26, %25 : vector<2x1xf32>
    %28 = arith.divf %26, %27 : vector<2x1xf32>
    %c0_19 = arith.constant 0 : index
    %c0_20 = arith.constant 0 : index
    %29 = vector.load %arg8[%c0_19, %c0_20] : memref<2x1xf32, #tpu.memory_space<vmem>>, vector<2x1xf32>
    tpu.vector_store %arg8[%c0_19, %c0_20], %28 {strides = array<i32>} : memref<2x1xf32, #tpu.memory_space<vmem>>, vector<2x1xf32>,
    return
  }
}

</mosaic_0001>

<llo_original>
// kernel: eye_classifier_forward.4
$region0: #{eye_classifier_forward.4}
  #allocation0 [shape = 'u32[]', space=smem, size = 0x4, offset = 0x4, fixed_abs, tag = 'smem constant byte address 0x4 - core index']
  #allocation1 [shape = 'u32[144,128]{1,0:T(1,128)}', space=vmem, size = 0x12000, scoped, tag = 'internal scratch']
  %s0 = inlined_call_operand.vmem [shape: bf16[392,9], index: 0, kind: input, shape index: {}]
  %s1 = inlined_call_operand.vmem [shape: bf16[9,32], index: 1, kind: input, shape index: {}]
  %s2 = inlined_call_operand.vmem [shape: f32[1,32], index: 2, kind: input, shape index: {}]
  %s3 = inlined_call_operand.vmem [shape: f32[1,32], index: 3, kind: input, shape index: {}]
  %s4 = inlined_call_operand.vmem [shape: f32[392,32], index: 4, kind: output, shape index: {}]
  %s5 = sld [smem:[#allocation0]]
  $region26: #{eye_classifier_forward.4} parent=0
    _
  %s7 = ssub.s32 1, %s5
  %s8 = scalar_select 0, %s7, %s5
  // Predicated region
  $region2: #{eye_classifier_forward.4} parent=0 // pred_check
    _
  $region3: #{eye_classifier_forward.4} parent=0 // pred_check_branch
    %10 = sbr.rel (0) target = $region5
  $region4: #{eye_classifier_forward.4} parent=0 // pred_region
    _
  $region5: #{eye_classifier_forward.4} parent=0 // pred_fallthru
    _
  // Predicated region
  $region6: #{eye_classifier_forward.4} parent=0 // pred_check
    _
  $region7: #{eye_classifier_forward.4} parent=0 // pred_check_branch
    %12 = sbr.rel (0) target = $region9
  $region8: #{eye_classifier_forward.4} parent=0 // pred_region
    _
  $region9: #{eye_classifier_forward.4} parent=0 // pred_fallthru
    _
  // Predicated region
  $region10: #{eye_classifier_forward.4} parent=0 // pred_check
    _
  $region11: #{eye_classifier_forward.4} parent=0 // pred_check_branch
    %14 = sbr.rel (0) target = $region13
  $region12: #{eye_classifier_forward.4} parent=0 // pred_region
    _
  $region13: #{eye_classifier_forward.4} parent=0 // pred_fallthru
    _
  // Predicated region
  $region14: #{eye_classifier_forward.4} parent=0 // pred_check
    _
  $region15: #{eye_classifier_forward.4} parent=0 // pred_check_branch
    %16 = sbr.rel (0) target = $region17
  $region16: #{eye_classifier_forward.4} parent=0 // pred_region
    _
  $region17: #{eye_classifier_forward.4} parent=0 // pred_fallthru
    _
  %v18 = vld [vmem:[%s0] sm:$0xf]
  %v19 = vld [vmem:[%s0 + $0x4] sm:$0xf]
  %v20 = vld [vmem:[%s0 + $0x8] sm:$0xf]
  %v21 = vld [vmem:[%s0 + $0xc] sm:$0xf]
  %v22 = vld [vmem:[%s0 + $0x10] sm:$0xf]
  %v23 = vld [vmem:[%s0 + $0x14] sm:$0xf]
  %v24 = vld [vmem:[%s0 + $0x18] sm:$0xf]
  %v25 = vld [vmem:[%s0 + $0x1c] sm:$0xf]
  %v26 = vld [vmem:[%s0 + $0x20] sm:$0xf]
  %v27 = vld [vmem:[%s0 + $0x24] sm:$0xf]
  %v28 = vld [vmem:[%s0 + $0x28] sm:$0xf]
  %v29 = vld [vmem:[%s0 + $0x2c] sm:$0xf]
  %v30 = vld [vmem:[%s0 + $0x30] sm:$0xf]
  %v31 = vld [vmem:[%s0 + $0x34] sm:$0xf]
  %v32 = vld [vmem:[%s0 + $0x38] sm:$0xf]
  %v33 = vld [vmem:[%s0 + $0x3c] sm:$0xf]
  %v34 = vld [vmem:[%s0 + $0x40] sm:$0xf]
  %v35 = vld [vmem:[%s0 + $0x44] sm:$0xf]
  %v36 = vld [vmem:[%s0 + $0x48] sm:$0xf]
  %v37 = vld [vmem:[%s0 + $0x4c] sm:$0xf]
  %v38 = vld [vmem:[%s0 + $0x50] sm:$0xf]
  %v39 = vld [vmem:[%s0 + $0x54] sm:$0xf]
  %v40 = vld [vmem:[%s0 + $0x58] sm:$0xf]
  %v41 = vld [vmem:[%s0 + $0x5c] sm:$0xf]
  %v42 = vld [vmem:[%s0 + $0x60] sm:$0xf]
  %v43 = vld [vmem:[%s0 + $0x64] sm:$0xf]
  %v44 = vld [vmem:[%s0 + $0x68] sm:$0xf]
  %v45 = vld [vmem:[%s0 + $0x6c] sm:$0xf]
  %v46 = vld [vmem:[%s0 + $0x70] sm:$0xf]
  %v47 = vld [vmem:[%s0 + $0x74] sm:$0xf]
  %v48 = vld [vmem:[%s0 + $0x78] sm:$0xf]
  %v49 = vld [vmem:[%s0 + $0x7c] sm:$0xf]
  %v50 = vld [vmem:[%s0 + $0x80] sm:$0xf]
  %v51 = vld [vmem:[%s0 + $0x84] sm:$0xf]
  %v52 = vld [vmem:[%s0 + $0x88] sm:$0xf]
  %v53 = vld [vmem:[%s0 + $0x8c] sm:$0xf]
  %v54 = vld [vmem:[%s0 + $0x90] sm:$0xf]
  %v55 = vld [vmem:[%s0 + $0x94] sm:$0xf]
  %v56 = vld [vmem:[%s0 + $0x98] sm:$0xf]
  %v57 = vld [vmem:[%s0 + $0x9c] sm:$0xf]
  %v58 = vld [vmem:[%s0 + $0xa0] sm:$0xf]
  %v59 = vld [vmem:[%s0 + $0xa4] sm:$0xf]
  %v60 = vld [vmem:[%s0 + $0xa8] sm:$0xf]
  %v61 = vld [vmem:[%s0 + $0xac] sm:$0xf]
  %v62 = vld [vmem:[%s0 + $0xb0] sm:$0xf]
  %v63 = vld [vmem:[%s0 + $0xb4] sm:$0xf]
  %v64 = vld [vmem:[%s0 + $0xb8] sm:$0xf]
  %v65 = vld [vmem:[%s0 + $0xbc] sm:$0xf]
  %v66 = vld [vmem:[%s0 + $0xc0] sm:$0xf]
  %v67 = vld [vmem:[%s1] sm:$0xf]
  %v68 = vld [vmem:[%s1 + $0x4] sm:$0x1]
  %v118 = vunpack.c.l.b16 %v18
  %v119 = vunpack.c.l.b16 %v19
  %v120 = vunpack.c.l.b16 %v20
  %v121 = vunpack.c.l.b16 %v21
  %v122 = vunpack.c.l.b16 %v22
  %v123 = vunpack.c.l.b16 %v23
  %v124 = vunpack.c.l.b16 %v24
  %v125 = vunpack.c.l.b16 %v25
  %v126 = vunpack.c.l.b16 %v26
  %v127 = vunpack.c.l.b16 %v27
  %v128 = vunpack.c.l.b16 %v28
  %v129 = vunpack.c.l.b16 %v29
  %v130 = vunpack.c.l.b16 %v30
  %v131 = vunpack.c.l.b16 %v31
  %v132 = vunpack.c.l.b16 %v32
  %v133 = vunpack.c.l.b16 %v33
  %v134 = vunpack.c.l.b16 %v34
  %v135 = vunpack.c.l.b16 %v35
  %v136 = vunpack.c.l.b16 %v36
  %v137 = vunpack.c.l.b16 %v37
  %v138 = vunpack.c.l.b16 %v38
  %v139 = vunpack.c.l.b16 %v39
  %v140 = vunpack.c.l.b16 %v40
  %v141 = vunpack.c.l.b16 %v41
  %v142 = vunpack.c.l.b16 %v42
  %v143 = vunpack.c.l.b16 %v43
  %v144 = vunpack.c.l.b16 %v44
  %v145 = vunpack.c.l.b16 %v45
  %v146 = vunpack.c.l.b16 %v46
  %v147 = vunpack.c.l.b16 %v47
  %v148 = vunpack.c.l.b16 %v48
  %v149 = vunpack.c.l.b16 %v49
  %v150 = vunpack.c.l.b16 %v50
  %v151 = vunpack.c.l.b16 %v51
  %v152 = vunpack.c.l.b16 %v52
  %v153 = vunpack.c.l.b16 %v53
  %v154 = vunpack.c.l.b16 %v54
  %v155 = vunpack.c.l.b16 %v55
  %v156 = vunpack.c.l.b16 %v56
  %v157 = vunpack.c.l.b16 %v57
  %v158 = vunpack.c.l.b16 %v58
  %v159 = vunpack.c.l.b16 %v59
  %v160 = vunpack.c.l.b16 %v60
  %v161 = vunpack.c.l.b16 %v61
  %v162 = vunpack.c.l.b16 %v62
  %v163 = vunpack.c.l.b16 %v63
  %v164 = vunpack.c.l.b16 %v64
  %v165 = vunpack.c.l.b16 %v65
  %v166 = vunpack.c.l.b16 %v66
  %v167 = vpack.c.b16 %v119, %v118
  %v168 = vpack.c.b16 %v121, %v120
  %v169 = vpack.c.b16 %v123, %v122
  %v170 = vpack.c.b16 %v125, %v124
  %v171 = vpack.c.b16 %v127, %v126
  %v172 = vpack.c.b16 %v129, %v128
  %v173 = vpack.c.b16 %v131, %v130
  %v174 = vpack.c.b16 %v133, %v132
  %v175 = vpack.c.b16 %v135, %v134
  %v176 = vpack.c.b16 %v137, %v136
  %v177 = vpack.c.b16 %v139, %v138
  %v178 = vpack.c.b16 %v141, %v140
  %v179 = vpack.c.b16 %v143, %v142
  %v180 = vpack.c.b16 %v145, %v144
  %v181 = vpack.c.b16 %v147, %v146
  %v182 = vpack.c.b16 %v149, %v148
  %v183 = vpack.c.b16 %v151, %v150
  %v184 = vpack.c.b16 %v153, %v152
  %v185 = vpack.c.b16 %v155, %v154
  %v186 = vpack.c.b16 %v157, %v156
  %v187 = vpack.c.b16 %v159, %v158
  %v188 = vpack.c.b16 %v161, %v160
  %v189 = vpack.c.b16 %v163, %v162
  %v190 = vpack.c.b16 %v165, %v164
  %v191 = vpack.c.b16 %v166, %v166
  %v194 = vunpack.c.l.b16 %v67
  %v195 = vunpack.c.l.b16 %v68
  %v196 = vpack.c.b16 %v195, %v194
  %vm197 = vcmask 72704
  %v199 = vsel %vm197, %v167, 0
  %v202 = vsel %vm197, %v168, 0
  %v205 = vsel %vm197, %v169, 0
  %v208 = vsel %vm197, %v170, 0
  %v211 = vsel %vm197, %v171, 0
  %v214 = vsel %vm197, %v172, 0
  %v217 = vsel %vm197, %v173, 0
  %v220 = vsel %vm197, %v174, 0
  %v223 = vsel %vm197, %v175, 0
  %v226 = vsel %vm197, %v176, 0
  %v229 = vsel %vm197, %v177, 0
  %v232 = vsel %vm197, %v178, 0
  %v235 = vsel %vm197, %v179, 0
  %v238 = vsel %vm197, %v180, 0
  %v241 = vsel %vm197, %v181, 0
  %v244 = vsel %vm197, %v182, 0
  %v247 = vsel %vm197, %v183, 0
  %v250 = vsel %vm197, %v184, 0
  %v253 = vsel %vm197, %v185, 0
  %v256 = vsel %vm197, %v186, 0
  %v259 = vsel %vm197, %v187, 0
  %v262 = vsel %vm197, %v188, 0
  %v265 = vsel %vm197, %v189, 0
  %v268 = vsel %vm197, %v190, 0
  %v271 = vsel %vm197, %v191, 0
  %vm273 = vcmask 1043456
  %vm274 = vcmask 1044480
  %v275 = vsel %vm273, 4294967295, 65535
  %v276 = vsel %vm274, %v275, 0
  %v278 = vand.u32 %v196, %v276
  %280 = vmatprep.subr.bf16.mxu0 0
  %281 = vmatpush1.bf16.msra.mxu0 %v278
  %282 = vmatprep.subr.bf16.mxu0 0
  %283 = vmatpush1.bf16.msra.mxu0 0
  %284 = vmatprep.subr.bf16.mxu0 0
  %285 = vmatpush1.bf16.msra.mxu0 0
  %286 = vmatprep.subr.bf16.mxu0 0
  %287 = vmatpush1.bf16.msra.mxu0 0
  %288 = vmatprep.subr.bf16.mxu0 0
  %289 = vmatpush1.bf16.msra.mxu0 0
  %290 = vmatprep.subr.bf16.mxu0 0
  %291 = vmatpush1.bf16.msra.mxu0 0
  %292 = vmatprep.subr.bf16.mxu0 0
  %293 = vmatpush1.bf16.msra.mxu0 0
  %294 = vmatprep.subr.bf16.mxu0 0
  %295 = vmatpush1.bf16.msra.mxu0 0
  %296 = vmatprep.subr.bf16.mxu0 0
  %297 = vmatpush1.bf16.msra.mxu0 0
  %298 = vmatprep.subr.bf16.mxu0 0
  %299 = vmatpush1.bf16.msra.mxu0 0
  %300 = vmatprep.subr.bf16.mxu0 0
  %301 = vmatpush1.bf16.msra.mxu0 0
  %302 = vmatprep.subr.bf16.mxu0 0
  %303 = vmatpush1.bf16.msra.mxu0 0
  %304 = vmatprep.subr.bf16.mxu0 0
  %305 = vmatpush1.bf16.msra.mxu0 0
  %306 = vmatprep.subr.bf16.mxu0 0
  %307 = vmatpush1.bf16.msra.mxu0 0
  %308 = vmatprep.subr.bf16.mxu0 0
  %309 = vmatpush1.bf16.msra.mxu0 0
  %310 = vmatprep.subr.bf16.mxu0 0
  %311 = vmatpush1.bf16.msra.mxu0 0
  %312 = vmatprep.mubr.bf16.mxu0 0
  %313 = vmatmul.mubr.bf16.gmra.mrb[0].mxu0 %v199
  %v314 = vpop.f32.mrb[0].mxu0
  %v315 = vadd.f32 0.0, %v314
  %v316 = vpop.f32.mrb[0].mxu0
  %v317 = vpop.f32.mrb[0].mxu0
  %v318 = vadd.f32 0.0, %v317
  %v319 = vpop.f32.mrb[0].mxu0
  %320 = vmatprep.mubr.bf16.mxu0 0
  %321 = vmatmul.mubr.bf16.gmra.mrb[0].mxu0 %v202
  %v322 = vpop.f32.mrb[0].mxu0
  %v323 = vadd.f32 0.0, %v322
  %v324 = vpop.f32.mrb[0].mxu0
  %v325 = vpop.f32.mrb[0].mxu0
  %v326 = vadd.f32 0.0, %v325
  %v327 = vpop.f32.mrb[0].mxu0
  %328 = vmatprep.mubr.bf16.mxu0 0
  %329 = vmatmul.mubr.bf16.gmra.mrb[0].mxu0 %v205
  %v330 = vpop.f32.mrb[0].mxu0
  %v331 = vadd.f32 0.0, %v330
  %v332 = vpop.f32.mrb[0].mxu0
  %v333 = vpop.f32.mrb[0].mxu0
  %v334 = vadd.f32 0.0, %v333
  %v335 = vpop.f32.mrb[0].mxu0
  %336 = vmatprep.mubr.bf16.mxu0 0
  %337 = vmatmul.mubr.bf16.gmra.mrb[0].mxu0 %v208
  %v338 = vpop.f32.mrb[0].mxu0
  %v339 = vadd.f32 0.0, %v338
  %v340 = vpop.f32.mrb[0].mxu0
  %v341 = vpop.f32.mrb[0].mxu0
  %v342 = vadd.f32 0.0, %v341
  %v343 = vpop.f32.mrb[0].mxu0
  %344 = vmatprep.mubr.bf16.mxu0 0
  %345 = vmatmul.mubr.bf16.gmra.mrb[0].mxu0 %v211
  %v346 = vpop.f32.mrb[0].mxu0
  %v347 = vadd.f32 0.0, %v346
  %v348 = vpop.f32.mrb[0].mxu0
  %v349 = vpop.f32.mrb[0].mxu0
  %v350 = vadd.f32 0.0, %v349
  %v351 = vpop.f32.mrb[0].mxu0
  %352 = vmatprep.mubr.bf16.mxu0 0
  %353 = vmatmul.mubr.bf16.gmra.mrb[0].mxu0 %v214
  %v354 = vpop.f32.mrb[0].mxu0
  %v355 = vadd.f32 0.0, %v354
  %v356 = vpop.f32.mrb[0].mxu0
  %v357 = vpop.f32.mrb[0].mxu0
  %v358 = vadd.f32 0.0, %v357
  %v359 = vpop.f32.mrb[0].mxu0
  %360 = vmatprep.mubr.bf16.mxu0 0
  %361 = vmatmul.mubr.bf16.gmra.mrb[0].mxu0 %v217
  %v362 = vpop.f32.mrb[0].mxu0
  %v363 = vadd.f32 0.0, %v362
  %v364 = vpop.f32.mrb[0].mxu0
  %v365 = vpop.f32.mrb[0].mxu0
  %v366 = vadd.f32 0.0, %v365
  %v367 = vpop.f32.mrb[0].mxu0
  %368 = vmatprep.mubr.bf16.mxu0 0
  %369 = vmatmul.mubr.bf16.gmra.mrb[0].mxu0 %v220
  %v370 = vpop.f32.mrb[0].mxu0
  %v371 = vadd.f32 0.0, %v370
  %v372 = vpop.f32.mrb[0].mxu0
  %v373 = vpop.f32.mrb[0].mxu0
  %v374 = vadd.f32 0.0, %v373
  %v375 = vpop.f32.mrb[0].mxu0
  %376 = vmatprep.mubr.bf16.mxu0 0
  %377 = vmatmul.mubr.bf16.gmra.mrb[0].mxu0 %v223
  %v378 = vpop.f32.mrb[0].mxu0
  %v379 = vadd.f32 0.0, %v378
  %v380 = vpop.f32.mrb[0].mxu0
  %v381 = vpop.f32.mrb[0].mxu0
  %v382 = vadd.f32 0.0, %v381
  %v383 = vpop.f32.mrb[0].mxu0
  %384 = vmatprep.mubr.bf16.mxu0 0
  %385 = vmatmul.mubr.bf16.gmra.mrb[0].mxu0 %v226
  %v386 = vpop.f32.mrb[0].mxu0
  %v387 = vadd.f32 0.0, %v386
  %v388 = vpop.f32.mrb[0].mxu0
  %v389 = vpop.f32.mrb[0].mxu0
  %v390 = vadd.f32 0.0, %v389
  %v391 = vpop.f32.mrb[0].mxu0
  %392 = vmatprep.mubr.bf16.mxu0 0
  %393 = vmatmul.mubr.bf16.gmra.mrb[0].mxu0 %v229
  %v394 = vpop.f32.mrb[0].mxu0
  %v395 = vadd.f32 0.0, %v394
  %v396 = vpop.f32.mrb[0].mxu0
  %v397 = vpop.f32.mrb[0].mxu0
  %v398 = vadd.f32 0.0, %v397
  %v399 = vpop.f32.mrb[0].mxu0
  %400 = vmatprep.mubr.bf16.mxu0 0
  %401 = vmatmul.mubr.bf16.gmra.mrb[0].mxu0 %v232
  %v402 = vpop.f32.mrb[0].mxu0
  %v403 = vadd.f32 0.0, %v402
  %v404 = vpop.f32.mrb[0].mxu0
  %v405 = vpop.f32.mrb[0].mxu0
  %v406 = vadd.f32 0.0, %v405
  %v407 = vpop.f32.mrb[0].mxu0
  %408 = vmatprep.mubr.bf16.mxu0 0
  %409 = vmatmul.mubr.bf16.gmra.mrb[0].mxu0 %v235
  %v410 = vpop.f32.mrb[0].mxu0
  %v411 = vadd.f32 0.0, %v410
  %v412 = vpop.f32.mrb[0].mxu0
  %v413 = vpop.f32.mrb[0].mxu0
  %v414 = vadd.f32 0.0, %v413
  %v415 = vpop.f32.mrb[0].mxu0
  %416 = vmatprep.mubr.bf16.mxu0 0
  %417 = vmatmul.mubr.bf16.gmra.mrb[0].mxu0 %v238
  %v418 = vpop.f32.mrb[0].mxu0
  %v419 = vadd.f32 0.0, %v418
  %v420 = vpop.f32.mrb[0].mxu0
  %v421 = vpop.f32.mrb[0].mxu0
  %v422 = vadd.f32 0.0, %v421
  %v423 = vpop.f32.mrb[0].mxu0
  %424 = vmatprep.mubr.bf16.mxu0 0
  %425 = vmatmul.mubr.bf16.gmra.mrb[0].mxu0 %v241
  %v426 = vpop.f32.mrb[0].mxu0
  %v427 = vadd.f32 0.0, %v426
  %v428 = vpop.f32.mrb[0].mxu0
  %v429 = vpop.f32.mrb[0].mxu0
  %v430 = vadd.f32 0.0, %v429
  %v431 = vpop.f32.mrb[0].mxu0
  %432 = vmatprep.mubr.bf16.mxu0 0
  %433 = vmatmul.mubr.bf16.gmra.mrb[0].mxu0 %v244
  %v434 = vpop.f32.mrb[0].mxu0
  %v435 = vadd.f32 0.0, %v434
  %v436 = vpop.f32.mrb[0].mxu0
  %v437 = vpop.f32.mrb[0].mxu0
  %v438 = vadd.f32 0.0, %v437
  %v439 = vpop.f32.mrb[0].mxu0
  %440 = vmatprep.mubr.bf16.mxu0 0
  %441 = vmatmul.mubr.bf16.gmra.mrb[0].mxu0 %v247
  %v442 = vpop.f32.mrb[0].mxu0
  %v443 = vadd.f32 0.0, %v442
  %v444 = vpop.f32.mrb[0].mxu0
  %v445 = vpop.f32.mrb[0].mxu0
  %v446 = vadd.f32 0.0, %v445
  %v447 = vpop.f32.mrb[0].mxu0
  %448 = vmatprep.mubr.bf16.mxu0 0
  %449 = vmatmul.mubr.bf16.gmra.mrb[0].mxu0 %v250
  %v450 = vpop.f32.mrb[0].mxu0
  %v451 = vadd.f32 0.0, %v450
  %v452 = vpop.f32.mrb[0].mxu0
  %v453 = vpop.f32.mrb[0].mxu0
  %v454 = vadd.f32 0.0, %v453
  %v455 = vpop.f32.mrb[0].mxu0
  %456 = vmatprep.mubr.bf16.mxu0 0
  %457 = vmatmul.mubr.bf16.gmra.mrb[0].mxu0 %v253
  %v458 = vpop.f32.mrb[0].mxu0
  %v459 = vadd.f32 0.0, %v458
  %v460 = vpop.f32.mrb[0].mxu0
  %v461 = vpop.f32.mrb[0].mxu0
  %v462 = vadd.f32 0.0, %v461
  %v463 = vpop.f32.mrb[0].mxu0
  %464 = vmatprep.mubr.bf16.mxu0 0
  %465 = vmatmul.mubr.bf16.gmra.mrb[0].mxu0 %v256
  %v466 = vpop.f32.mrb[0].mxu0
  %v467 = vadd.f32 0.0, %v466
  %v468 = vpop.f32.mrb[0].mxu0
  %v469 = vpop.f32.mrb[0].mxu0
  %v470 = vadd.f32 0.0, %v469
  %v471 = vpop.f32.mrb[0].mxu0
  %472 = vmatprep.mubr.bf16.mxu0 0
  %473 = vmatmul.mubr.bf16.gmra.mrb[0].mxu0 %v259
  %v474 = vpop.f32.mrb[0].mxu0
  %v475 = vadd.f32 0.0, %v474
  %v476 = vpop.f32.mrb[0].mxu0
  %v477 = vpop.f32.mrb[0].mxu0
  %v478 = vadd.f32 0.0, %v477
  %v479 = vpop.f32.mrb[0].mxu0
  %480 = vmatprep.mubr.bf16.mxu0 0
  %481 = vmatmul.mubr.bf16.gmra.mrb[0].mxu0 %v262
  %v482 = vpop.f32.mrb[0].mxu0
  %v483 = vadd.f32 0.0, %v482
  %v484 = vpop.f32.mrb[0].mxu0
  %v485 = vpop.f32.mrb[0].mxu0
  %v486 = vadd.f32 0.0, %v485
  %v487 = vpop.f32.mrb[0].mxu0
  %488 = vmatprep.mubr.bf16.mxu0 0
  %489 = vmatmul.mubr.bf16.gmra.mrb[0].mxu0 %v265
  %v490 = vpop.f32.mrb[0].mxu0
  %v491 = vadd.f32 0.0, %v490
  %v492 = vpop.f32.mrb[0].mxu0
  %v493 = vpop.f32.mrb[0].mxu0
  %v494 = vadd.f32 0.0, %v493
  %v495 = vpop.f32.mrb[0].mxu0
  %496 = vmatprep.mubr.bf16.mxu0 0
  %497 = vmatmul.mubr.bf16.gmra.mrb[0].mxu0 %v268
  %v498 = vpop.f32.mrb[0].mxu0
  %v499 = vadd.f32 0.0, %v498
  %v500 = vpop.f32.mrb[0].mxu0
  %v501 = vpop.f32.mrb[0].mxu0
  %v502 = vadd.f32 0.0, %v501
  %v503 = vpop.f32.mrb[0].mxu0
  %504 = vmatprep.mubr.bf16.mxu0 0
  %505 = vmatmul.mubr.bf16.gmra.mrb[0].mxu0 %v271
  %v506 = vpop.f32.mrb[0].mxu0
  %v507 = vadd.f32 0.0, %v506
  %v508 = vpop.f32.mrb[0].mxu0
  %v509 = vpop.f32.mrb[0].mxu0
  %v510 = vpop.f32.mrb[0].mxu0
  %511 = vdwg.mxu0
  %v512 = vld [vmem:[%s2] sm:$0x1]
  %v514 = vlaneseq
  %v515 = vshrl.u32 %v514, 7
  %v516 = vsub.s32 0, %v515
  %v517 = vrot.slane %v512, %v516
  %v519 = vmul.f32 %v315, %v517
  %v520 = vmul.f32 %v318, %v517
  %v521 = vmul.f32 %v323, %v517
  %v522 = vmul.f32 %v326, %v517
  %v523 = vmul.f32 %v331, %v517
  %v524 = vmul.f32 %v334, %v517
  %v525 = vmul.f32 %v339, %v517
  %v526 = vmul.f32 %v342, %v517
  %v527 = vmul.f32 %v347, %v517
  %v528 = vmul.f32 %v350, %v517
  %v529 = vmul.f32 %v355, %v517
  %v530 = vmul.f32 %v358, %v517
  %v531 = vmul.f32 %v363, %v517
  %v532 = vmul.f32 %v366, %v517
  %v533 = vmul.f32 %v371, %v517
  %v534 = vmul.f32 %v374, %v517
  %v535 = vmul.f32 %v379, %v517
  %v536 = vmul.f32 %v382, %v517
  %v537 = vmul.f32 %v387, %v517
  %v538 = vmul.f32 %v390, %v517
  %v539 = vmul.f32 %v395, %v517
  %v540 = vmul.f32 %v398, %v517
  %v541 = vmul.f32 %v403, %v517
  %v542 = vmul.f32 %v406, %v517
  %v543 = vmul.f32 %v411, %v517
  %v544 = vmul.f32 %v414, %v517
  %v545 = vmul.f32 %v419, %v517
  %v546 = vmul.f32 %v422, %v517
  %v547 = vmul.f32 %v427, %v517
  %v548 = vmul.f32 %v430, %v517
  %v549 = vmul.f32 %v435, %v517
  %v550 = vmul.f32 %v438, %v517
  %v551 = vmul.f32 %v443, %v517
  %v552 = vmul.f32 %v446, %v517
  %v553 = vmul.f32 %v451, %v517
  %v554 = vmul.f32 %v454, %v517
  %v555 = vmul.f32 %v459, %v517
  %v556 = vmul.f32 %v462, %v517
  %v557 = vmul.f32 %v467, %v517
  %v558 = vmul.f32 %v470, %v517
  %v559 = vmul.f32 %v475, %v517
  %v560 = vmul.f32 %v478, %v517
  %v561 = vmul.f32 %v483, %v517
  %v562 = vmul.f32 %v486, %v517
  %v563 = vmul.f32 %v491, %v517
  %v564 = vmul.f32 %v494, %v517
  %v565 = vmul.f32 %v499, %v517
  %v566 = vmul.f32 %v502, %v517
  %v567 = vmul.f32 %v507, %v517
  %v568 = vld [vmem:[%s3] sm:$0x1]
  %v570 = vlaneseq
  %v571 = vshrl.u32 %v570, 7
  %v572 = vsub.s32 0, %v571
  %v573 = vrot.slane %v568, %v572
  %v575 = vadd.f32 %v519, %v573
  %v576 = vadd.f32 %v520, %v573
  %v577 = vadd.f32 %v521, %v573
  %v578 = vadd.f32 %v522, %v573
  %v579 = vadd.f32 %v523, %v573
  %v580 = vadd.f32 %v524, %v573
  %v581 = vadd.f32 %v525, %v573
  %v582 = vadd.f32 %v526, %v573
  %v583 = vadd.f32 %v527, %v573
  %v584 = vadd.f32 %v528, %v573
  %v585 = vadd.f32 %v529, %v573
  %v586 = vadd.f32 %v530, %v573
  %v587 = vadd.f32 %v531, %v573
  %v588 = vadd.f32 %v532, %v573
  %v589 = vadd.f32 %v533, %v573
  %v590 = vadd.f32 %v534, %v573
  %v591 = vadd.f32 %v535, %v573
  %v592 = vadd.f32 %v536, %v573
  %v593 = vadd.f32 %v537, %v573
  %v594 = vadd.f32 %v538, %v573
  %v595 = vadd.f32 %v539, %v573
  %v596 = vadd.f32 %v540, %v573
  %v597 = vadd.f32 %v541, %v573
  %v598 = vadd.f32 %v542, %v573
  %v599 = vadd.f32 %v543, %v573
  %v600 = vadd.f32 %v544, %v573
  %v601 = vadd.f32 %v545, %v573
  %v602 = vadd.f32 %v546, %v573
  %v603 = vadd.f32 %v547, %v573
  %v604 = vadd.f32 %v548, %v573
  %v605 = vadd.f32 %v549, %v573
  %v606 = vadd.f32 %v550, %v573
  %v607 = vadd.f32 %v551, %v573
  %v608 = vadd.f32 %v552, %v573
  %v609 = vadd.f32 %v553, %v573
  %v610 = vadd.f32 %v554, %v573
  %v611 = vadd.f32 %v555, %v573
  %v612 = vadd.f32 %v556, %v573
  %v613 = vadd.f32 %v557, %v573
  %v614 = vadd.f32 %v558, %v573
  %v615 = vadd.f32 %v559, %v573
  %v616 = vadd.f32 %v560, %v573
  %v617 = vadd.f32 %v561, %v573
  %v618 = vadd.f32 %v562, %v573
  %v619 = vadd.f32 %v563, %v573
  %v620 = vadd.f32 %v564, %v573
  %v621 = vadd.f32 %v565, %v573
  %v622 = vadd.f32 %v566, %v573
  %v623 = vadd.f32 %v567, %v573
  %v624 = vmax.f32 %v575, 0.0
  %v625 = vmax.f32 %v576, 0.0
  %v626 = vmax.f32 %v577, 0.0
  %v627 = vmax.f32 %v578, 0.0
  %v628 = vmax.f32 %v579, 0.0
  %v629 = vmax.f32 %v580, 0.0
  %v630 = vmax.f32 %v581, 0.0
  %v631 = vmax.f32 %v582, 0.0
  %v632 = vmax.f32 %v583, 0.0
  %v633 = vmax.f32 %v584, 0.0
  %v634 = vmax.f32 %v585, 0.0
  %v635 = vmax.f32 %v586, 0.0
  %v636 = vmax.f32 %v587, 0.0
  %v637 = vmax.f32 %v588, 0.0
  %v638 = vmax.f32 %v589, 0.0
  %v639 = vmax.f32 %v590, 0.0
  %v640 = vmax.f32 %v591, 0.0
  %v641 = vmax.f32 %v592, 0.0
  %v642 = vmax.f32 %v593, 0.0
  %v643 = vmax.f32 %v594, 0.0
  %v644 = vmax.f32 %v595, 0.0
  %v645 = vmax.f32 %v596, 0.0
  %v646 = vmax.f32 %v597, 0.0
  %v647 = vmax.f32 %v598, 0.0
  %v648 = vmax.f32 %v599, 0.0
  %v649 = vmax.f32 %v600, 0.0
  %v650 = vmax.f32 %v601, 0.0
  %v651 = vmax.f32 %v602, 0.0
  %v652 = vmax.f32 %v603, 0.0
  %v653 = vmax.f32 %v604, 0.0
  %v654 = vmax.f32 %v605, 0.0
  %v655 = vmax.f32 %v606, 0.0
  %v656 = vmax.f32 %v607, 0.0
  %v657 = vmax.f32 %v608, 0.0
  %v658 = vmax.f32 %v609, 0.0
  %v659 = vmax.f32 %v610, 0.0
  %v660 = vmax.f32 %v611, 0.0
  %v661 = vmax.f32 %v612, 0.0
  %v662 = vmax.f32 %v613, 0.0
  %v663 = vmax.f32 %v614, 0.0
  %v664 = vmax.f32 %v615, 0.0
  %v665 = vmax.f32 %v616, 0.0
  %v666 = vmax.f32 %v617, 0.0
  %v667 = vmax.f32 %v618, 0.0
  %v668 = vmax.f32 %v619, 0.0
  %v669 = vmax.f32 %v620, 0.0
  %v670 = vmax.f32 %v621, 0.0
  %v671 = vmax.f32 %v622, 0.0
  %v672 = vmax.f32 %v623, 0.0
  %vm673 = vcmask 261120
  %674 = vst.msk [vmem:[%s4] sm:$0xff] %vm673, %v624
  %675 = vst.msk [vmem:[%s4 + $0x8] sm:$0xff] %vm673, %v625
  %676 = vst.msk [vmem:[%s4 + $0x10] sm:$0xff] %vm673, %v626
  %677 = vst.msk [vmem:[%s4 + $0x18] sm:$0xff] %vm673, %v627
  %678 = vst.msk [vmem:[%s4 + $0x20] sm:$0xff] %vm673, %v628
  %679 = vst.msk [vmem:[%s4 + $0x28] sm:$0xff] %vm673, %v629
  %680 = vst.msk [vmem:[%s4 + $0x30] sm:$0xff] %vm673, %v630
  %681 = vst.msk [vmem:[%s4 + $0x38] sm:$0xff] %vm673, %v631
  %682 = vst.msk [vmem:[%s4 + $0x40] sm:$0xff] %vm673, %v632
  %683 = vst.msk [vmem:[%s4 + $0x48] sm:$0xff] %vm673, %v633
  %684 = vst.msk [vmem:[%s4 + $0x50] sm:$0xff] %vm673, %v634
  %685 = vst.msk [vmem:[%s4 + $0x58] sm:$0xff] %vm673, %v635
  %686 = vst.msk [vmem:[%s4 + $0x60] sm:$0xff] %vm673, %v636
  %687 = vst.msk [vmem:[%s4 + $0x68] sm:$0xff] %vm673, %v637
  %688 = vst.msk [vmem:[%s4 + $0x70] sm:$0xff] %vm673, %v638
  %689 = vst.msk [vmem:[%s4 + $0x78] sm:$0xff] %vm673, %v639
  %690 = vst.msk [vmem:[%s4 + $0x80] sm:$0xff] %vm673, %v640
  %691 = vst.msk [vmem:[%s4 + $0x88] sm:$0xff] %vm673, %v641
  %692 = vst.msk [vmem:[%s4 + $0x90] sm:$0xff] %vm673, %v642
  %693 = vst.msk [vmem:[%s4 + $0x98] sm:$0xff] %vm673, %v643
  %694 = vst.msk [vmem:[%s4 + $0xa0] sm:$0xff] %vm673, %v644
  %695 = vst.msk [vmem:[%s4 + $0xa8] sm:$0xff] %vm673, %v645
  %696 = vst.msk [vmem:[%s4 + $0xb0] sm:$0xff] %vm673, %v646
  %697 = vst.msk [vmem:[%s4 + $0xb8] sm:$0xff] %vm673, %v647
  %698 = vst.msk [vmem:[%s4 + $0xc0] sm:$0xff] %vm673, %v648
  %699 = vst.msk [vmem:[%s4 + $0xc8] sm:$0xff] %vm673, %v649
  %700 = vst.msk [vmem:[%s4 + $0xd0] sm:$0xff] %vm673, %v650
  %701 = vst.msk [vmem:[%s4 + $0xd8] sm:$0xff] %vm673, %v651
  %702 = vst.msk [vmem:[%s4 + $0xe0] sm:$0xff] %vm673, %v652
  %703 = vst.msk [vmem:[%s4 + $0xe8] sm:$0xff] %vm673, %v653
  %704 = vst.msk [vmem:[%s4 + $0xf0] sm:$0xff] %vm673, %v654
  %705 = vst.msk [vmem:[%s4 + $0xf8] sm:$0xff] %vm673, %v655
  %706 = vst.msk [vmem:[%s4 + $0x100] sm:$0xff] %vm673, %v656
  %707 = vst.msk [vmem:[%s4 + $0x108] sm:$0xff] %vm673, %v657
  %708 = vst.msk [vmem:[%s4 + $0x110] sm:$0xff] %vm673, %v658
  %709 = vst.msk [vmem:[%s4 + $0x118] sm:$0xff] %vm673, %v659
  %710 = vst.msk [vmem:[%s4 + $0x120] sm:$0xff] %vm673, %v660
  %711 = vst.msk [vmem:[%s4 + $0x128] sm:$0xff] %vm673, %v661
  %712 = vst.msk [vmem:[%s4 + $0x130] sm:$0xff] %vm673, %v662
  %713 = vst.msk [vmem:[%s4 + $0x138] sm:$0xff] %vm673, %v663
  %714 = vst.msk [vmem:[%s4 + $0x140] sm:$0xff] %vm673, %v664
  %715 = vst.msk [vmem:[%s4 + $0x148] sm:$0xff] %vm673, %v665
  %716 = vst.msk [vmem:[%s4 + $0x150] sm:$0xff] %vm673, %v666
  %717 = vst.msk [vmem:[%s4 + $0x158] sm:$0xff] %vm673, %v667
  %718 = vst.msk [vmem:[%s4 + $0x160] sm:$0xff] %vm673, %v668
  %719 = vst.msk [vmem:[%s4 + $0x168] sm:$0xff] %vm673, %v669
  %720 = vst.msk [vmem:[%s4 + $0x170] sm:$0xff] %vm673, %v670
  %721 = vst.msk [vmem:[%s4 + $0x178] sm:$0xff] %vm673, %v671
  %722 = vst.msk [vmem:[%s4 + $0x180] sm:$0xff] %vm673, %v672
  // Predicated region
  $region18: #{eye_classifier_forward.4} parent=0 // pred_check
    _
  $region19: #{eye_classifier_forward.4} parent=0 // pred_check_branch
    %724 = sbr.rel (0) target = $region21
  $region20: #{eye_classifier_forward.4} parent=0 // pred_region
    _
  $region21: #{eye_classifier_forward.4} parent=0 // pred_fallthru
    _
  // Predicated region
  $region22: #{eye_classifier_forward.4} parent=0 // pred_check
    _
  $region23: #{eye_classifier_forward.4} parent=0 // pred_check_branch
    %726 = sbr.rel (0) target = $region25
  $region24: #{eye_classifier_forward.4} parent=0 // pred_region
    _
  $region25: #{eye_classifier_forward.4} parent=0 // pred_fallthru
    _

// kernel: eye_classifier_forward.5
$region0: #{eye_classifier_forward.5}
  #allocation0 [shape = 'u32[]', space=smem, size = 0x4, offset = 0x4, fixed_abs, tag = 'smem constant byte address 0x4 - core index']
  #allocation1 [shape = 'u32[144,128]{1,0:T(1,128)}', space=vmem, size = 0x12000, scoped, tag = 'internal scratch']
  %s0 = inlined_call_operand.vmem [shape: bf16[98,288], index: 0, kind: input, shape index: {}]
  %s1 = inlined_call_operand.vmem [shape: bf16[288,64], index: 1, kind: input, shape index: {}]
  %s2 = inlined_call_operand.vmem [shape: f32[1,64], index: 2, kind: input, shape index: {}]
  %s3 = inlined_call_operand.vmem [shape: f32[1,64], index: 3, kind: input, shape index: {}]
  %s4 = inlined_call_operand.vmem [shape: f32[98,64], index: 4, kind: output, shape index: {}]
  %s5 = sld [smem:[#allocation0]]
  $region26: #{eye_classifier_forward.5} parent=0
    _
  %s7 = ssub.s32 1, %s5
  %s8 = scalar_select 0, %s7, %s5
  // Predicated region
  $region2: #{eye_classifier_forward.5} parent=0 // pred_check
    _
  $region3: #{eye_classifier_forward.5} parent=0 // pred_check_branch
    %10 = sbr.rel (0) target = $region5
  $region4: #{eye_classifier_forward.5} parent=0 // pred_region
    _
  $region5: #{eye_classifier_forward.5} parent=0 // pred_fallthru
    _
  // Predicated region
  $region6: #{eye_classifier_forward.5} parent=0 // pred_check
    _
  $region7: #{eye_classifier_forward.5} parent=0 // pred_check_branch
    %12 = sbr.rel (0) target = $region9
  $region8: #{eye_classifier_forward.5} parent=0 // pred_region
    _
  $region9: #{eye_classifier_forward.5} parent=0 // pred_fallthru
    _
  // Predicated region
  $region10: #{eye_classifier_forward.5} parent=0 // pred_check
    _
  $region11: #{eye_classifier_forward.5} parent=0 // pred_check_branch
    %14 = sbr.rel (0) target = $region13
  $region12: #{eye_classifier_forward.5} parent=0 // pred_region
    _
  $region13: #{eye_classifier_forward.5} parent=0 // pred_fallthru
    _
  // Predicated region
  $region14: #{eye_classifier_forward.5} parent=0 // pred_check
    _
  $region15: #{eye_classifier_forward.5} parent=0 // pred_check_branch
    %16 = sbr.rel (0) target = $region17
  $region16: #{eye_classifier_forward.5} parent=0 // pred_region
    _
  $region17: #{eye_classifier_forward.5} parent=0 // pred_fallthru
    _
  %v18 = vld [vmem:[%s0] sm:$0xff]
  %v19 = vld [vmem:[%s0 + $0x8] sm:$0xf]
  %v20 = vld [vmem:[%s0 + $0xc] sm:$0xff]
  %v21 = vld [vmem:[%s0 + $0x14] sm:$0xf]
  %v22 = vld [vmem:[%s0 + $0x18] sm:$0xff]
  %v23 = vld [vmem:[%s0 + $0x20] sm:$0xf]
  %v24 = vld [vmem:[%s0 + $0x24] sm:$0xff]
  %v25 = vld [vmem:[%s0 + $0x2c] sm:$0xf]
  %v26 = vld [vmem:[%s0 + $0x30] sm:$0xff]
  %v27 = vld [vmem:[%s0 + $0x38] sm:$0xf]
  %v28 = vld [vmem:[%s0 + $0x3c] sm:$0xff]
  %v29 = vld [vmem:[%s0 + $0x44] sm:$0xf]
  %v30 = vld [vmem:[%s0 + $0x48] sm:$0xff]
  %v31 = vld [vmem:[%s0 + $0x50] sm:$0xf]
  %v32 = vld [vmem:[%s0 + $0x54] sm:$0xff]
  %v33 = vld [vmem:[%s0 + $0x5c] sm:$0xf]
  %v34 = vld [vmem:[%s0 + $0x60] sm:$0xff]
  %v35 = vld [vmem:[%s0 + $0x68] sm:$0xf]
  %v36 = vld [vmem:[%s0 + $0x6c] sm:$0xff]
  %v37 = vld [vmem:[%s0 + $0x74] sm:$0xf]
  %v38 = vld [vmem:[%s0 + $0x78] sm:$0xff]
  %v39 = vld [vmem:[%s0 + $0x80] sm:$0xf]
  %v40 = vld [vmem:[%s0 + $0x84] sm:$0xff]
  %v41 = vld [vmem:[%s0 + $0x8c] sm:$0xf]
  %v42 = vld [vmem:[%s0 + $0x90] sm:$0x11]
  %v43 = vld [vmem:[%s0 + $0x98] sm:$0x1]
  %v44 = vld [vmem:[%s1] sm:$0xf]
  %v45 = vld [vmem:[%s1 + $0x4] sm:$0xf]
  %v46 = vld [vmem:[%s1 + $0x8] sm:$0xf]
  %v47 = vld [vmem:[%s1 + $0xc] sm:$0xf]
  %v48 = vld [vmem:[%s1 + $0x10] sm:$0xf]
  %v49 = vld [vmem:[%s1 + $0x14] sm:$0xf]
  %v50 = vld [vmem:[%s1 + $0x18] sm:$0xf]
  %v51 = vld [vmem:[%s1 + $0x1c] sm:$0xf]
  %v52 = vld [vmem:[%s1 + $0x20] sm:$0xf]
  %v53 = vld [vmem:[%s1 + $0x24] sm:$0xf]
  %v54 = vld [vmem:[%s1 + $0x28] sm:$0xf]
  %v55 = vld [vmem:[%s1 + $0x2c] sm:$0xf]
  %v56 = vld [vmem:[%s1 + $0x30] sm:$0xf]
  %v57 = vld [vmem:[%s1 + $0x34] sm:$0xf]
  %v58 = vld [vmem:[%s1 + $0x38] sm:$0xf]
  %v59 = vld [vmem:[%s1 + $0x3c] sm:$0xf]
  %v60 = vld [vmem:[%s1 + $0x40] sm:$0xf]
  %v61 = vld [vmem:[%s1 + $0x44] sm:$0xf]
  %v62 = vld [vmem:[%s1 + $0x48] sm:$0xf]
  %v63 = vld [vmem:[%s1 + $0x4c] sm:$0xf]
  %v64 = vld [vmem:[%s1 + $0x50] sm:$0xf]
  %v65 = vld [vmem:[%s1 + $0x54] sm:$0xf]
  %v66 = vld [vmem:[%s1 + $0x58] sm:$0xf]
  %v67 = vld [vmem:[%s1 + $0x5c] sm:$0xf]
  %v68 = vld [vmem:[%s1 + $0x60] sm:$0xf]
  %v69 = vld [vmem:[%s1 + $0x64] sm:$0xf]
  %v70 = vld [vmem:[%s1 + $0x68] sm:$0xf]
  %v71 = vld [vmem:[%s1 + $0x6c] sm:$0xf]
  %v72 = vld [vmem:[%s1 + $0x70] sm:$0xf]
  %v73 = vld [vmem:[%s1 + $0x74] sm:$0xf]
  %v74 = vld [vmem:[%s1 + $0x78] sm:$0xf]
  %v75 = vld [vmem:[%s1 + $0x7c] sm:$0xf]
  %v76 = vld [vmem:[%s1 + $0x80] sm:$0xf]
  %v77 = vld [vmem:[%s1 + $0x84] sm:$0xf]
  %v78 = vld [vmem:[%s1 + $0x88] sm:$0xf]
  %v79 = vld [vmem:[%s1 + $0x8c] sm:$0xf]
  %v106 = vunpack.c.l.b16 %v18
  %v107 = vunpack.c.h.b16 %v18
  %v108 = vunpack.c.l.b16 %v19
  %v109 = vunpack.c.l.b16 %v20
  %v110 = vunpack.c.h.b16 %v20
  %v111 = vunpack.c.l.b16 %v21
  %v112 = vunpack.c.l.b16 %v22
  %v113 = vunpack.c.h.b16 %v22
  %v114 = vunpack.c.l.b16 %v23
  %v115 = vunpack.c.l.b16 %v24
  %v116 = vunpack.c.h.b16 %v24
  %v117 = vunpack.c.l.b16 %v25
  %v118 = vunpack.c.l.b16 %v26
  %v119 = vunpack.c.h.b16 %v26
  %v120 = vunpack.c.l.b16 %v27
  %v121 = vunpack.c.l.b16 %v28
  %v122 = vunpack.c.h.b16 %v28
  %v123 = vunpack.c.l.b16 %v29
  %v124 = vunpack.c.l.b16 %v30
  %v125 = vunpack.c.h.b16 %v30
  %v126 = vunpack.c.l.b16 %v31
  %v127 = vunpack.c.l.b16 %v32
  %v128 = vunpack.c.h.b16 %v32
  %v129 = vunpack.c.l.b16 %v33
  %v130 = vunpack.c.l.b16 %v34
  %v131 = vunpack.c.h.b16 %v34
  %v132 = vunpack.c.l.b16 %v35
  %v133 = vunpack.c.l.b16 %v36
  %v134 = vunpack.c.h.b16 %v36
  %v135 = vunpack.c.l.b16 %v37
  %v136 = vunpack.c.l.b16 %v38
  %v137 = vunpack.c.h.b16 %v38
  %v138 = vunpack.c.l.b16 %v39
  %v139 = vunpack.c.l.b16 %v40
  %v140 = vunpack.c.h.b16 %v40
  %v141 = vunpack.c.l.b16 %v41
  %v142 = vunpack.c.l.b16 %v42
  %v143 = vunpack.c.h.b16 %v42
  %v144 = vunpack.c.l.b16 %v43
  %v145 = vpack.c.b16 %v109, %v106
  %v146 = vpack.c.b16 %v110, %v107
  %v147 = vpack.c.b16 %v111, %v108
  %v148 = vpack.c.b16 %v115, %v112
  %v149 = vpack.c.b16 %v116, %v113
  %v150 = vpack.c.b16 %v117, %v114
  %v151 = vpack.c.b16 %v121, %v118
  %v152 = vpack.c.b16 %v122, %v119
  %v153 = vpack.c.b16 %v123, %v120
  %v154 = vpack.c.b16 %v127, %v124
  %v155 = vpack.c.b16 %v128, %v125
  %v156 = vpack.c.b16 %v129, %v126
  %v157 = vpack.c.b16 %v133, %v130
  %v158 = vpack.c.b16 %v134, %v131
  %v159 = vpack.c.b16 %v135, %v132
  %v160 = vpack.c.b16 %v139, %v136
  %v161 = vpack.c.b16 %v140, %v137
  %v162 = vpack.c.b16 %v141, %v138
  %v163 = vpack.c.b16 %v142, %v142
  %v164 = vpack.c.b16 %v143, %v143
  %v165 = vpack.c.b16 %v144, %v144
  %v216 = vunpack.c.l.b16 %v44
  %v217 = vunpack.c.l.b16 %v45
  %v218 = vunpack.c.l.b16 %v46
  %v219 = vunpack.c.l.b16 %v47
  %v220 = vunpack.c.l.b16 %v48
  %v221 = vunpack.c.l.b16 %v49
  %v222 = vunpack.c.l.b16 %v50
  %v223 = vunpack.c.l.b16 %v51
  %v224 = vunpack.c.l.b16 %v52
  %v225 = vunpack.c.l.b16 %v53
  %v226 = vunpack.c.l.b16 %v54
  %v227 = vunpack.c.l.b16 %v55
  %v228 = vunpack.c.l.b16 %v56
  %v229 = vunpack.c.l.b16 %v57
  %v230 = vunpack.c.l.b16 %v58
  %v231 = vunpack.c.l.b16 %v59
  %v232 = vunpack.c.l.b16 %v60
  %v233 = vunpack.c.l.b16 %v61
  %v234 = vunpack.c.l.b16 %v62
  %v235 = vunpack.c.l.b16 %v63
  %v236 = vunpack.c.l.b16 %v64
  %v237 = vunpack.c.l.b16 %v65
  %v238 = vunpack.c.l.b16 %v66
  %v239 = vunpack.c.l.b16 %v67
  %v240 = vunpack.c.l.b16 %v68
  %v241 = vunpack.c.l.b16 %v69
  %v242 = vunpack.c.l.b16 %v70
  %v243 = vunpack.c.l.b16 %v71
  %v244 = vunpack.c.l.b16 %v72
  %v245 = vunpack.c.l.b16 %v73
  %v246 = vunpack.c.l.b16 %v74
  %v247 = vunpack.c.l.b16 %v75
  %v248 = vunpack.c.l.b16 %v76
  %v249 = vunpack.c.l.b16 %v77
  %v250 = vunpack.c.l.b16 %v78
  %v251 = vunpack.c.l.b16 %v79
  %v252 = vpack.c.b16 %v217, %v216
  %v253 = vpack.c.b16 %v219, %v218
  %v254 = vpack.c.b16 %v221, %v220
  %v255 = vpack.c.b16 %v223, %v222
  %v256 = vpack.c.b16 %v225, %v224
  %v257 = vpack.c.b16 %v227, %v226
  %v258 = vpack.c.b16 %v229, %v228
  %v259 = vpack.c.b16 %v231, %v230
  %v260 = vpack.c.b16 %v233, %v232
  %v261 = vpack.c.b16 %v235, %v234
  %v262 = vpack.c.b16 %v237, %v236
  %v263 = vpack.c.b16 %v239, %v238
  %v264 = vpack.c.b16 %v241, %v240
  %v265 = vpack.c.b16 %v243, %v242
  %v266 = vpack.c.b16 %v245, %v244
  %v267 = vpack.c.b16 %v247, %v246
  %v268 = vpack.c.b16 %v249, %v248
  %v269 = vpack.c.b16 %v251, %v250
  %vm288 = vcmask 261120
  %v290 = vsel %vm288, %v147, 0
  %v293 = vsel %vm288, %v150, 0
  %v296 = vsel %vm288, %v153, 0
  %v299 = vsel %vm288, %v156, 0
  %v302 = vsel %vm288, %v159, 0
  %v305 = vsel %vm288, %v162, 0
  %v308 = vsel %vm288, %v165, 0
  %310 = vmatprep.subr.bf16.mxu0 0
  %311 = vmatpush1.bf16.msra.mxu0 %v252
  %312 = vmatprep.subr.bf16.mxu0 0
  %313 = vmatpush1.bf16.msra.mxu0 %v253
  %314 = vmatprep.subr.bf16.mxu0 0
  %315 = vmatpush1.bf16.msra.mxu0 %v254
  %316 = vmatprep.subr.bf16.mxu0 0
  %317 = vmatpush1.bf16.msra.mxu0 %v255
  %318 = vmatprep.subr.bf16.mxu0 0
  %319 = vmatpush1.bf16.msra.mxu0 %v256
  %320 = vmatprep.subr.bf16.mxu0 0
  %321 = vmatpush1.bf16.msra.mxu0 %v257
  %322 = vmatprep.subr.bf16.mxu0 0
  %323 = vmatpush1.bf16.msra.mxu0 %v258
  %324 = vmatprep.subr.bf16.mxu0 0
  %325 = vmatpush1.bf16.msra.mxu0 %v259
  %326 = vmatprep.subr.bf16.mxu0 0
  %327 = vmatpush1.bf16.msra.mxu0 %v260
  %328 = vmatprep.subr.bf16.mxu0 0
  %329 = vmatpush1.bf16.msra.mxu0 %v261
  %330 = vmatprep.subr.bf16.mxu0 0
  %331 = vmatpush1.bf16.msra.mxu0 %v262
  %332 = vmatprep.subr.bf16.mxu0 0
  %333 = vmatpush1.bf16.msra.mxu0 %v263
  %334 = vmatprep.subr.bf16.mxu0 0
  %335 = vmatpush1.bf16.msra.mxu0 %v264
  %336 = vmatprep.subr.bf16.mxu0 0
  %337 = vmatpush1.bf16.msra.mxu0 %v265
  %338 = vmatprep.subr.bf16.mxu0 0
  %339 = vmatpush1.bf16.msra.mxu0 %v266
  %340 = vmatprep.subr.bf16.mxu0 0
  %341 = vmatpush1.bf16.msra.mxu0 %v267
  %342 = vmatprep.mubr.bf16.mxu0 %v146
  %343 = vmatmul.mubr.bf16.gmra.mrb[0].mxu0 %v145
  %v344 = vpop.f32.mrb[0].mxu0
  %v345 = vadd.f32 0.0, %v344
  %v346 = vpop.f32.mrb[0].mxu0
  %v347 = vpop.f32.mrb[0].mxu0
  %v348 = vadd.f32 0.0, %v347
  %v349 = vpop.f32.mrb[0].mxu0
  %350 = vmatprep.mubr.bf16.mxu0 %v149
  %351 = vmatmul.mubr.bf16.gmra.mrb[0].mxu0 %v148
  %v352 = vpop.f32.mrb[0].mxu0
  %v353 = vadd.f32 0.0, %v352
  %v354 = vpop.f32.mrb[0].mxu0
  %v355 = vpop.f32.mrb[0].mxu0
  %v356 = vadd.f32 0.0, %v355
  %v357 = vpop.f32.mrb[0].mxu0
  %358 = vmatprep.mubr.bf16.mxu0 %v152
  %359 = vmatmul.mubr.bf16.gmra.mrb[0].mxu0 %v151
  %v360 = vpop.f32.mrb[0].mxu0
  %v361 = vadd.f32 0.0, %v360
  %v362 = vpop.f32.mrb[0].mxu0
  %v363 = vpop.f32.mrb[0].mxu0
  %v364 = vadd.f32 0.0, %v363
  %v365 = vpop.f32.mrb[0].mxu0
  %366 = vmatprep.mubr.bf16.mxu0 %v155
  %367 = vmatmul.mubr.bf16.gmra.mrb[0].mxu0 %v154
  %v368 = vpop.f32.mrb[0].mxu0
  %v369 = vadd.f32 0.0, %v368
  %v370 = vpop.f32.mrb[0].mxu0
  %v371 = vpop.f32.mrb[0].mxu0
  %v372 = vadd.f32 0.0, %v371
  %v373 = vpop.f32.mrb[0].mxu0
  %374 = vmatprep.mubr.bf16.mxu0 %v158
  %375 = vmatmul.mubr.bf16.gmra.mrb[0].mxu0 %v157
  %v376 = vpop.f32.mrb[0].mxu0
  %v377 = vadd.f32 0.0, %v376
  %v378 = vpop.f32.mrb[0].mxu0
  %v379 = vpop.f32.mrb[0].mxu0
  %v380 = vadd.f32 0.0, %v379
  %v381 = vpop.f32.mrb[0].mxu0
  %382 = vmatprep.mubr.bf16.mxu0 %v161
  %383 = vmatmul.mubr.bf16.gmra.mrb[0].mxu0 %v160
  %v384 = vpop.f32.mrb[0].mxu0
  %v385 = vadd.f32 0.0, %v384
  %v386 = vpop.f32.mrb[0].mxu0
  %v387 = vpop.f32.mrb[0].mxu0
  %v388 = vadd.f32 0.0, %v387
  %v389 = vpop.f32.mrb[0].mxu0
  %390 = vmatprep.mubr.bf16.mxu0 %v164
  %391 = vmatmul.mubr.bf16.gmra.mrb[0].mxu0 %v163
  %v392 = vpop.f32.mrb[0].mxu0
  %v393 = vadd.f32 0.0, %v392
  %v394 = vpop.f32.mrb[0].mxu0
  %v395 = vpop.f32.mrb[0].mxu0
  %v396 = vpop.f32.mrb[0].mxu0
  %397 = vdwg.mxu0
  %398 = vmatprep.subr.bf16.mxu0 0
  %399 = vmatpush1.bf16.msra.mxu0 %v268
  %400 = vmatprep.subr.bf16.mxu0 0
  %401 = vmatpush1.bf16.msra.mxu0 %v269
  %402 = vmatprep.subr.bf16.mxu0 0
  %403 = vmatpush1.bf16.msra.mxu0 0
  %404 = vmatprep.subr.bf16.mxu0 0
  %405 = vmatpush1.bf16.msra.mxu0 0
  %406 = vmatprep.subr.bf16.mxu0 0
  %407 = vmatpush1.bf16.msra.mxu0 0
  %408 = vmatprep.subr.bf16.mxu0 0
  %409 = vmatpush1.bf16.msra.mxu0 0
  %410 = vmatprep.subr.bf16.mxu0 0
  %411 = vmatpush1.bf16.msra.mxu0 0
  %412 = vmatprep.subr.bf16.mxu0 0
  %413 = vmatpush1.bf16.msra.mxu0 0
  %414 = vmatprep.subr.bf16.mxu0 0
  %415 = vmatpush1.bf16.msra.mxu0 0
  %416 = vmatprep.subr.bf16.mxu0 0
  %417 = vmatpush1.bf16.msra.mxu0 0
  %418 = vmatprep.subr.bf16.mxu0 0
  %419 = vmatpush1.bf16.msra.mxu0 0
  %420 = vmatprep.subr.bf16.mxu0 0
  %421 = vmatpush1.bf16.msra.mxu0 0
  %422 = vmatprep.subr.bf16.mxu0 0
  %423 = vmatpush1.bf16.msra.mxu0 0
  %424 = vmatprep.subr.bf16.mxu0 0
  %425 = vmatpush1.bf16.msra.mxu0 0
  %426 = vmatprep.subr.bf16.mxu0 0
  %427 = vmatpush1.bf16.msra.mxu0 0
  %428 = vmatprep.subr.bf16.mxu0 0
  %429 = vmatpush1.bf16.msra.mxu0 0
  %430 = vmatprep.mubr.bf16.mxu0 0
  %431 = vmatmul.mubr.bf16.gmra.mrb[0].mxu0 %v290
  %v432 = vpop.f32.mrb[0].mxu0
  %v433 = vadd.f32 %v345, %v432
  %v434 = vpop.f32.mrb[0].mxu0
  %v435 = vpop.f32.mrb[0].mxu0
  %v436 = vadd.f32 %v348, %v435
  %v437 = vpop.f32.mrb[0].mxu0
  %438 = vmatprep.mubr.bf16.mxu0 0
  %439 = vmatmul.mubr.bf16.gmra.mrb[0].mxu0 %v293
  %v440 = vpop.f32.mrb[0].mxu0
  %v441 = vadd.f32 %v353, %v440
  %v442 = vpop.f32.mrb[0].mxu0
  %v443 = vpop.f32.mrb[0].mxu0
  %v444 = vadd.f32 %v356, %v443
  %v445 = vpop.f32.mrb[0].mxu0
  %446 = vmatprep.mubr.bf16.mxu0 0
  %447 = vmatmul.mubr.bf16.gmra.mrb[0].mxu0 %v296
  %v448 = vpop.f32.mrb[0].mxu0
  %v449 = vadd.f32 %v361, %v448
  %v450 = vpop.f32.mrb[0].mxu0
  %v451 = vpop.f32.mrb[0].mxu0
  %v452 = vadd.f32 %v364, %v451
  %v453 = vpop.f32.mrb[0].mxu0
  %454 = vmatprep.mubr.bf16.mxu0 0
  %455 = vmatmul.mubr.bf16.gmra.mrb[0].mxu0 %v299
  %v456 = vpop.f32.mrb[0].mxu0
  %v457 = vadd.f32 %v369, %v456
  %v458 = vpop.f32.mrb[0].mxu0
  %v459 = vpop.f32.mrb[0].mxu0
  %v460 = vadd.f32 %v372, %v459
  %v461 = vpop.f32.mrb[0].mxu0
  %462 = vmatprep.mubr.bf16.mxu0 0
  %463 = vmatmul.mubr.bf16.gmra.mrb[0].mxu0 %v302
  %v464 = vpop.f32.mrb[0].mxu0
  %v465 = vadd.f32 %v377, %v464
  %v466 = vpop.f32.mrb[0].mxu0
  %v467 = vpop.f32.mrb[0].mxu0
  %v468 = vadd.f32 %v380, %v467
  %v469 = vpop.f32.mrb[0].mxu0
  %470 = vmatprep.mubr.bf16.mxu0 0
  %471 = vmatmul.mubr.bf16.gmra.mrb[0].mxu0 %v305
  %v472 = vpop.f32.mrb[0].mxu0
  %v473 = vadd.f32 %v385, %v472
  %v474 = vpop.f32.mrb[0].mxu0
  %v475 = vpop.f32.mrb[0].mxu0
  %v476 = vadd.f32 %v388, %v475
  %v477 = vpop.f32.mrb[0].mxu0
  %478 = vmatprep.mubr.bf16.mxu0 0
  %479 = vmatmul.mubr.bf16.gmra.mrb[0].mxu0 %v308
  %v480 = vpop.f32.mrb[0].mxu0
  %v481 = vadd.f32 %v393, %v480
  %v482 = vpop.f32.mrb[0].mxu0
  %v483 = vpop.f32.mrb[0].mxu0
  %v484 = vpop.f32.mrb[0].mxu0
  %485 = vdwg.mxu0
  %v486 = vld [vmem:[%s2] sm:$0x1]
  %v488 = vlaneseq
  %v489 = vshrl.u32 %v488, 7
  %v490 = vsub.s32 0, %v489
  %v491 = vrot.slane %v486, %v490
  %v493 = vmul.f32 %v433, %v491
  %v494 = vmul.f32 %v436, %v491
  %v495 = vmul.f32 %v441, %v491
  %v496 = vmul.f32 %v444, %v491
  %v497 = vmul.f32 %v449, %v491
  %v498 = vmul.f32 %v452, %v491
  %v499 = vmul.f32 %v457, %v491
  %v500 = vmul.f32 %v460, %v491
  %v501 = vmul.f32 %v465, %v491
  %v502 = vmul.f32 %v468, %v491
  %v503 = vmul.f32 %v473, %v491
  %v504 = vmul.f32 %v476, %v491
  %v505 = vmul.f32 %v481, %v491
  %v506 = vld [vmem:[%s3] sm:$0x1]
  %v508 = vlaneseq
  %v509 = vshrl.u32 %v508, 7
  %v510 = vsub.s32 0, %v509
  %v511 = vrot.slane %v506, %v510
  %v513 = vadd.f32 %v493, %v511
  %v514 = vadd.f32 %v494, %v511
  %v515 = vadd.f32 %v495, %v511
  %v516 = vadd.f32 %v496, %v511
  %v517 = vadd.f32 %v497, %v511
  %v518 = vadd.f32 %v498, %v511
  %v519 = vadd.f32 %v499, %v511
  %v520 = vadd.f32 %v500, %v511
  %v521 = vadd.f32 %v501, %v511
  %v522 = vadd.f32 %v502, %v511
  %v523 = vadd.f32 %v503, %v511
  %v524 = vadd.f32 %v504, %v511
  %v525 = vadd.f32 %v505, %v511
  %v526 = vmax.f32 %v513, 0.0
  %v527 = vmax.f32 %v514, 0.0
  %v528 = vmax.f32 %v515, 0.0
  %v529 = vmax.f32 %v516, 0.0
  %v530 = vmax.f32 %v517, 0.0
  %v531 = vmax.f32 %v518, 0.0
  %v532 = vmax.f32 %v519, 0.0
  %v533 = vmax.f32 %v520, 0.0
  %v534 = vmax.f32 %v521, 0.0
  %v535 = vmax.f32 %v522, 0.0
  %v536 = vmax.f32 %v523, 0.0
  %v537 = vmax.f32 %v524, 0.0
  %v538 = vmax.f32 %v525, 0.0
  %vm539 = vcmask 523264
  %540 = vst.msk [vmem:[%s4] sm:$0xff] %vm539, %v526
  %541 = vst.msk [vmem:[%s4 + $0x8] sm:$0xff] %vm539, %v527
  %542 = vst.msk [vmem:[%s4 + $0x10] sm:$0xff] %vm539, %v528
  %543 = vst.msk [vmem:[%s4 + $0x18] sm:$0xff] %vm539, %v529
  %544 = vst.msk [vmem:[%s4 + $0x20] sm:$0xff] %vm539, %v530
  %545 = vst.msk [vmem:[%s4 + $0x28] sm:$0xff] %vm539, %v531
  %546 = vst.msk [vmem:[%s4 + $0x30] sm:$0xff] %vm539, %v532
  %547 = vst.msk [vmem:[%s4 + $0x38] sm:$0xff] %vm539, %v533
  %548 = vst.msk [vmem:[%s4 + $0x40] sm:$0xff] %vm539, %v534
  %549 = vst.msk [vmem:[%s4 + $0x48] sm:$0xff] %vm539, %v535
  %550 = vst.msk [vmem:[%s4 + $0x50] sm:$0xff] %vm539, %v536
  %551 = vst.msk [vmem:[%s4 + $0x58] sm:$0xff] %vm539, %v537
  %vm552 = vcmask 517120
  %553 = vst.msk [vmem:[%s4 + $0x60] sm:$0x3] %vm552, %v538
  // Predicated region
  $region18: #{eye_classifier_forward.5} parent=0 // pred_check
    _
  $region19: #{eye_classifier_forward.5} parent=0 // pred_check_branch
    %555 = sbr.rel (0) target = $region21
  $region20: #{eye_classifier_forward.5} parent=0 // pred_region
    _
  $region21: #{eye_classifier_forward.5} parent=0 // pred_fallthru
    _
  // Predicated region
  $region22: #{eye_classifier_forward.5} parent=0 // pred_check
    _
  $region23: #{eye_classifier_forward.5} parent=0 // pred_check_branch
    %557 = sbr.rel (0) target = $region25
  $region24: #{eye_classifier_forward.5} parent=0 // pred_region
    _
  $region25: #{eye_classifier_forward.5} parent=0 // pred_fallthru
    _

// kernel: eye_classifier_forward.6
$region0: #{eye_classifier_forward.6}
  #allocation0 [shape = 'u32[]', space=smem, size = 0x4, offset = 0x4, fixed_abs, tag = 'smem constant byte address 0x4 - core index']
  #allocation1 [shape = 'u32[144,128]{1,0:T(1,128)}', space=vmem, size = 0x12000, scoped, tag = 'internal scratch']
  %s0 = inlined_call_operand.vmem [shape: bf16[32,576], index: 0, kind: input, shape index: {}]
  %s1 = inlined_call_operand.vmem [shape: bf16[576,128], index: 1, kind: input, shape index: {}]
  %s2 = inlined_call_operand.vmem [shape: f32[1,128], index: 2, kind: input, shape index: {}]
  %s3 = inlined_call_operand.vmem [shape: f32[1,128], index: 3, kind: input, shape index: {}]
  %s4 = inlined_call_operand.vmem [shape: f32[32,128], index: 4, kind: output, shape index: {}]
  %s5 = sld [smem:[#allocation0]]
  $region26: #{eye_classifier_forward.6} parent=0
    _
  %s7 = ssub.s32 1, %s5
  %s8 = scalar_select 0, %s7, %s5
  // Predicated region
  $region2: #{eye_classifier_forward.6} parent=0 // pred_check
    _
  $region3: #{eye_classifier_forward.6} parent=0 // pred_check_branch
    %10 = sbr.rel (0) target = $region5
  $region4: #{eye_classifier_forward.6} parent=0 // pred_region
    _
  $region5: #{eye_classifier_forward.6} parent=0 // pred_fallthru
    _
  // Predicated region
  $region6: #{eye_classifier_forward.6} parent=0 // pred_check
    _
  $region7: #{eye_classifier_forward.6} parent=0 // pred_check_branch
    %12 = sbr.rel (0) target = $region9
  $region8: #{eye_classifier_forward.6} parent=0 // pred_region
    _
  $region9: #{eye_classifier_forward.6} parent=0 // pred_fallthru
    _
  // Predicated region
  $region10: #{eye_classifier_forward.6} parent=0 // pred_check
    _
  $region11: #{eye_classifier_forward.6} parent=0 // pred_check_branch
    %14 = sbr.rel (0) target = $region13
  $region12: #{eye_classifier_forward.6} parent=0 // pred_region
    _
  $region13: #{eye_classifier_forward.6} parent=0 // pred_fallthru
    _
  // Predicated region
  $region14: #{eye_classifier_forward.6} parent=0 // pred_check
    _
  $region15: #{eye_classifier_forward.6} parent=0 // pred_check_branch
    %16 = sbr.rel (0) target = $region17
  $region16: #{eye_classifier_forward.6} parent=0 // pred_region
    _
  $region17: #{eye_classifier_forward.6} parent=0 // pred_fallthru
    _
  %v18 = vld [vmem:[%s0] sm:$0xff]
  %v19 = vld [vmem:[%s0 + $0x8] sm:$0xff]
  %v20 = vld [vmem:[%s0 + $0x10] sm:$0xf]
  %v21 = vld [vmem:[%s0 + $0x14] sm:$0xff]
  %v22 = vld [vmem:[%s0 + $0x1c] sm:$0xff]
  %v23 = vld [vmem:[%s0 + $0x24] sm:$0xf]
  %v24 = vld [vmem:[%s0 + $0x28] sm:$0xff]
  %v25 = vld [vmem:[%s0 + $0x30] sm:$0xff]
  %v26 = vld [vmem:[%s0 + $0x38] sm:$0xf]
  %v27 = vld [vmem:[%s0 + $0x3c] sm:$0xff]
  %v28 = vld [vmem:[%s0 + $0x44] sm:$0xff]
  %v29 = vld [vmem:[%s0 + $0x4c] sm:$0xf]
  %v30 = vld [vmem:[%s1] sm:$0xf]
  %v31 = vld [vmem:[%s1 + $0x4] sm:$0xf]
  %v32 = vld [vmem:[%s1 + $0x8] sm:$0xf]
  %v33 = vld [vmem:[%s1 + $0xc] sm:$0xf]
  %v34 = vld [vmem:[%s1 + $0x10] sm:$0xf]
  %v35 = vld [vmem:[%s1 + $0x14] sm:$0xf]
  %v36 = vld [vmem:[%s1 + $0x18] sm:$0xf]
  %v37 = vld [vmem:[%s1 + $0x1c] sm:$0xf]
  %v38 = vld [vmem:[%s1 + $0x20] sm:$0xf]
  %v39 = vld [vmem:[%s1 + $0x24] sm:$0xf]
  %v40 = vld [vmem:[%s1 + $0x28] sm:$0xf]
  %v41 = vld [vmem:[%s1 + $0x2c] sm:$0xf]
  %v42 = vld [vmem:[%s1 + $0x30] sm:$0xf]
  %v43 = vld [vmem:[%s1 + $0x34] sm:$0xf]
  %v44 = vld [vmem:[%s1 + $0x38] sm:$0xf]
  %v45 = vld [vmem:[%s1 + $0x3c] sm:$0xf]
  %v46 = vld [vmem:[%s1 + $0x40] sm:$0xf]
  %v47 = vld [vmem:[%s1 + $0x44] sm:$0xf]
  %v48 = vld [vmem:[%s1 + $0x48] sm:$0xf]
  %v49 = vld [vmem:[%s1 + $0x4c] sm:$0xf]
  %v50 = vld [vmem:[%s1 + $0x50] sm:$0xf]
  %v51 = vld [vmem:[%s1 + $0x54] sm:$0xf]
  %v52 = vld [vmem:[%s1 + $0x58] sm:$0xf]
  %v53 = vld [vmem:[%s1 + $0x5c] sm:$0xf]
  %v54 = vld [vmem:[%s1 + $0x60] sm:$0xf]
  %v55 = vld [vmem:[%s1 + $0x64] sm:$0xf]
  %v56 = vld [vmem:[%s1 + $0x68] sm:$0xf]
  %v57 = vld [vmem:[%s1 + $0x6c] sm:$0xf]
  %v58 = vld [vmem:[%s1 + $0x70] sm:$0xf]
  %v59 = vld [vmem:[%s1 + $0x74] sm:$0xf]
  %v60 = vld [vmem:[%s1 + $0x78] sm:$0xf]
  %v61 = vld [vmem:[%s1 + $0x7c] sm:$0xf]
  %v62 = vld [vmem:[%s1 + $0x80] sm:$0xf]
  %v63 = vld [vmem:[%s1 + $0x84] sm:$0xf]
  %v64 = vld [vmem:[%s1 + $0x88] sm:$0xf]
  %v65 = vld [vmem:[%s1 + $0x8c] sm:$0xf]
  %v66 = vld [vmem:[%s1 + $0x90] sm:$0xf]
  %v67 = vld [vmem:[%s1 + $0x94] sm:$0xf]
  %v68 = vld [vmem:[%s1 + $0x98] sm:$0xf]
  %v69 = vld [vmem:[%s1 + $0x9c] sm:$0xf]
  %v70 = vld [vmem:[%s1 + $0xa0] sm:$0xf]
  %v71 = vld [vmem:[%s1 + $0xa4] sm:$0xf]
  %v72 = vld [vmem:[%s1 + $0xa8] sm:$0xf]
  %v73 = vld [vmem:[%s1 + $0xac] sm:$0xf]
  %v74 = vld [vmem:[%s1 + $0xb0] sm:$0xf]
  %v75 = vld [vmem:[%s1 + $0xb4] sm:$0xf]
  %v76 = vld [vmem:[%s1 + $0xb8] sm:$0xf]
  %v77 = vld [vmem:[%s1 + $0xbc] sm:$0xf]
  %v78 = vld [vmem:[%s1 + $0xc0] sm:$0xf]
  %v79 = vld [vmem:[%s1 + $0xc4] sm:$0xf]
  %v80 = vld [vmem:[%s1 + $0xc8] sm:$0xf]
  %v81 = vld [vmem:[%s1 + $0xcc] sm:$0xf]
  %v82 = vld [vmem:[%s1 + $0xd0] sm:$0xf]
  %v83 = vld [vmem:[%s1 + $0xd4] sm:$0xf]
  %v84 = vld [vmem:[%s1 + $0xd8] sm:$0xf]
  %v85 = vld [vmem:[%s1 + $0xdc] sm:$0xf]
  %v86 = vld [vmem:[%s1 + $0xe0] sm:$0xf]
  %v87 = vld [vmem:[%s1 + $0xe4] sm:$0xf]
  %v88 = vld [vmem:[%s1 + $0xe8] sm:$0xf]
  %v89 = vld [vmem:[%s1 + $0xec] sm:$0xf]
  %v90 = vld [vmem:[%s1 + $0xf0] sm:$0xf]
  %v91 = vld [vmem:[%s1 + $0xf4] sm:$0xf]
  %v92 = vld [vmem:[%s1 + $0xf8] sm:$0xf]
  %v93 = vld [vmem:[%s1 + $0xfc] sm:$0xf]
  %v94 = vld [vmem:[%s1 + $0x100] sm:$0xf]
  %v95 = vld [vmem:[%s1 + $0x104] sm:$0xf]
  %v96 = vld [vmem:[%s1 + $0x108] sm:$0xf]
  %v97 = vld [vmem:[%s1 + $0x10c] sm:$0xf]
  %v98 = vld [vmem:[%s1 + $0x110] sm:$0xf]
  %v99 = vld [vmem:[%s1 + $0x114] sm:$0xf]
  %v100 = vld [vmem:[%s1 + $0x118] sm:$0xf]
  %v101 = vld [vmem:[%s1 + $0x11c] sm:$0xf]
  %v114 = vunpack.c.l.b16 %v18
  %v115 = vunpack.c.h.b16 %v18
  %v116 = vunpack.c.l.b16 %v19
  %v117 = vunpack.c.h.b16 %v19
  %v118 = vunpack.c.l.b16 %v20
  %v119 = vunpack.c.l.b16 %v21
  %v120 = vunpack.c.h.b16 %v21
  %v121 = vunpack.c.l.b16 %v22
  %v122 = vunpack.c.h.b16 %v22
  %v123 = vunpack.c.l.b16 %v23
  %v124 = vunpack.c.l.b16 %v24
  %v125 = vunpack.c.h.b16 %v24
  %v126 = vunpack.c.l.b16 %v25
  %v127 = vunpack.c.h.b16 %v25
  %v128 = vunpack.c.l.b16 %v26
  %v129 = vunpack.c.l.b16 %v27
  %v130 = vunpack.c.h.b16 %v27
  %v131 = vunpack.c.l.b16 %v28
  %v132 = vunpack.c.h.b16 %v28
  %v133 = vunpack.c.l.b16 %v29
  %v134 = vpack.c.b16 %v119, %v114
  %v135 = vpack.c.b16 %v120, %v115
  %v136 = vpack.c.b16 %v121, %v116
  %v137 = vpack.c.b16 %v122, %v117
  %v138 = vpack.c.b16 %v123, %v118
  %v139 = vpack.c.b16 %v129, %v124
  %v140 = vpack.c.b16 %v130, %v125
  %v141 = vpack.c.b16 %v131, %v126
  %v142 = vpack.c.b16 %v132, %v127
  %v143 = vpack.c.b16 %v133, %v128
  %v224 = vunpack.c.l.b16 %v30
  %v225 = vunpack.c.l.b16 %v31
  %v226 = vunpack.c.l.b16 %v32
  %v227 = vunpack.c.l.b16 %v33
  %v228 = vunpack.c.l.b16 %v34
  %v229 = vunpack.c.l.b16 %v35
  %v230 = vunpack.c.l.b16 %v36
  %v231 = vunpack.c.l.b16 %v37
  %v232 = vunpack.c.l.b16 %v38
  %v233 = vunpack.c.l.b16 %v39
  %v234 = vunpack.c.l.b16 %v40
  %v235 = vunpack.c.l.b16 %v41
  %v236 = vunpack.c.l.b16 %v42
  %v237 = vunpack.c.l.b16 %v43
  %v238 = vunpack.c.l.b16 %v44
  %v239 = vunpack.c.l.b16 %v45
  %v240 = vunpack.c.l.b16 %v46
  %v241 = vunpack.c.l.b16 %v47
  %v242 = vunpack.c.l.b16 %v48
  %v243 = vunpack.c.l.b16 %v49
  %v244 = vunpack.c.l.b16 %v50
  %v245 = vunpack.c.l.b16 %v51
  %v246 = vunpack.c.l.b16 %v52
  %v247 = vunpack.c.l.b16 %v53
  %v248 = vunpack.c.l.b16 %v54
  %v249 = vunpack.c.l.b16 %v55
  %v250 = vunpack.c.l.b16 %v56
  %v251 = vunpack.c.l.b16 %v57
  %v252 = vunpack.c.l.b16 %v58
  %v253 = vunpack.c.l.b16 %v59
  %v254 = vunpack.c.l.b16 %v60
  %v255 = vunpack.c.l.b16 %v61
  %v256 = vunpack.c.l.b16 %v62
  %v257 = vunpack.c.l.b16 %v63
  %v258 = vunpack.c.l.b16 %v64
  %v259 = vunpack.c.l.b16 %v65
  %v260 = vunpack.c.l.b16 %v66
  %v261 = vunpack.c.l.b16 %v67
  %v262 = vunpack.c.l.b16 %v68
  %v263 = vunpack.c.l.b16 %v69
  %v264 = vunpack.c.l.b16 %v70
  %v265 = vunpack.c.l.b16 %v71
  %v266 = vunpack.c.l.b16 %v72
  %v267 = vunpack.c.l.b16 %v73
  %v268 = vunpack.c.l.b16 %v74
  %v269 = vunpack.c.l.b16 %v75
  %v270 = vunpack.c.l.b16 %v76
  %v271 = vunpack.c.l.b16 %v77
  %v272 = vunpack.c.l.b16 %v78
  %v273 = vunpack.c.l.b16 %v79
  %v274 = vunpack.c.l.b16 %v80
  %v275 = vunpack.c.l.b16 %v81
  %v276 = vunpack.c.l.b16 %v82
  %v277 = vunpack.c.l.b16 %v83
  %v278 = vunpack.c.l.b16 %v84
  %v279 = vunpack.c.l.b16 %v85
  %v280 = vunpack.c.l.b16 %v86
  %v281 = vunpack.c.l.b16 %v87
  %v282 = vunpack.c.l.b16 %v88
  %v283 = vunpack.c.l.b16 %v89
  %v284 = vunpack.c.l.b16 %v90
  %v285 = vunpack.c.l.b16 %v91
  %v286 = vunpack.c.l.b16 %v92
  %v287 = vunpack.c.l.b16 %v93
  %v288 = vunpack.c.l.b16 %v94
  %v289 = vunpack.c.l.b16 %v95
  %v290 = vunpack.c.l.b16 %v96
  %v291 = vunpack.c.l.b16 %v97
  %v292 = vunpack.c.l.b16 %v98
  %v293 = vunpack.c.l.b16 %v99
  %v294 = vunpack.c.l.b16 %v100
  %v295 = vunpack.c.l.b16 %v101
  %v296 = vpack.c.b16 %v225, %v224
  %v297 = vpack.c.b16 %v227, %v226
  %v298 = vpack.c.b16 %v229, %v228
  %v299 = vpack.c.b16 %v231, %v230
  %v300 = vpack.c.b16 %v233, %v232
  %v301 = vpack.c.b16 %v235, %v234
  %v302 = vpack.c.b16 %v237, %v236
  %v303 = vpack.c.b16 %v239, %v238
  %v304 = vpack.c.b16 %v241, %v240
  %v305 = vpack.c.b16 %v243, %v242
  %v306 = vpack.c.b16 %v245, %v244
  %v307 = vpack.c.b16 %v247, %v246
  %v308 = vpack.c.b16 %v249, %v248
  %v309 = vpack.c.b16 %v251, %v250
  %v310 = vpack.c.b16 %v253, %v252
  %v311 = vpack.c.b16 %v255, %v254
  %v312 = vpack.c.b16 %v257, %v256
  %v313 = vpack.c.b16 %v259, %v258
  %v314 = vpack.c.b16 %v261, %v260
  %v315 = vpack.c.b16 %v263, %v262
  %v316 = vpack.c.b16 %v265, %v264
  %v317 = vpack.c.b16 %v267, %v266
  %v318 = vpack.c.b16 %v269, %v268
  %v319 = vpack.c.b16 %v271, %v270
  %v320 = vpack.c.b16 %v273, %v272
  %v321 = vpack.c.b16 %v275, %v274
  %v322 = vpack.c.b16 %v277, %v276
  %v323 = vpack.c.b16 %v279, %v278
  %v324 = vpack.c.b16 %v281, %v280
  %v325 = vpack.c.b16 %v283, %v282
  %v326 = vpack.c.b16 %v285, %v284
  %v327 = vpack.c.b16 %v287, %v286
  %v328 = vpack.c.b16 %v289, %v288
  %v329 = vpack.c.b16 %v291, %v290
  %v330 = vpack.c.b16 %v293, %v292
  %v331 = vpack.c.b16 %v295, %v294
  %vm368 = vcmask 523264
  %v370 = vsel %vm368, %v138, 0
  %v373 = vsel %vm368, %v143, 0
  %375 = vmatprep.subr.bf16.mxu0 0
  %376 = vmatpush1.bf16.msra.mxu0 %v296
  %377 = vmatprep.subr.bf16.mxu0 0
  %378 = vmatpush1.bf16.msra.mxu0 %v297
  %379 = vmatprep.subr.bf16.mxu0 0
  %380 = vmatpush1.bf16.msra.mxu0 %v298
  %381 = vmatprep.subr.bf16.mxu0 0
  %382 = vmatpush1.bf16.msra.mxu0 %v299
  %383 = vmatprep.subr.bf16.mxu0 0
  %384 = vmatpush1.bf16.msra.mxu0 %v300
  %385 = vmatprep.subr.bf16.mxu0 0
  %386 = vmatpush1.bf16.msra.mxu0 %v301
  %387 = vmatprep.subr.bf16.mxu0 0
  %388 = vmatpush1.bf16.msra.mxu0 %v302
  %389 = vmatprep.subr.bf16.mxu0 0
  %390 = vmatpush1.bf16.msra.mxu0 %v303
  %391 = vmatprep.subr.bf16.mxu0 0
  %392 = vmatpush1.bf16.msra.mxu0 %v304
  %393 = vmatprep.subr.bf16.mxu0 0
  %394 = vmatpush1.bf16.msra.mxu0 %v305
  %395 = vmatprep.subr.bf16.mxu0 0
  %396 = vmatpush1.bf16.msra.mxu0 %v306
  %397 = vmatprep.subr.bf16.mxu0 0
  %398 = vmatpush1.bf16.msra.mxu0 %v307
  %399 = vmatprep.subr.bf16.mxu0 0
  %400 = vmatpush1.bf16.msra.mxu0 %v308
  %401 = vmatprep.subr.bf16.mxu0 0
  %402 = vmatpush1.bf16.msra.mxu0 %v309
  %403 = vmatprep.subr.bf16.mxu0 0
  %404 = vmatpush1.bf16.msra.mxu0 %v310
  %405 = vmatprep.subr.bf16.mxu0 0
  %406 = vmatpush1.bf16.msra.mxu0 %v311
  %407 = vmatprep.mubr.bf16.mxu0 %v135
  %408 = vmatmul.mubr.bf16.gmra.mrb[0].mxu0 %v134
  %v409 = vpop.f32.mrb[0].mxu0
  %v410 = vadd.f32 0.0, %v409
  %v411 = vpop.f32.mrb[0].mxu0
  %v412 = vpop.f32.mrb[0].mxu0
  %v413 = vadd.f32 0.0, %v412
  %v414 = vpop.f32.mrb[0].mxu0
  %415 = vmatprep.mubr.bf16.mxu0 %v140
  %416 = vmatmul.mubr.bf16.gmra.mrb[0].mxu0 %v139
  %v417 = vpop.f32.mrb[0].mxu0
  %v418 = vadd.f32 0.0, %v417
  %v419 = vpop.f32.mrb[0].mxu0
  %v420 = vpop.f32.mrb[0].mxu0
  %v421 = vadd.f32 0.0, %v420
  %v422 = vpop.f32.mrb[0].mxu0
  %423 = vdwg.mxu0
  %424 = vmatprep.subr.bf16.mxu0 0
  %425 = vmatpush1.bf16.msra.mxu0 %v312
  %426 = vmatprep.subr.bf16.mxu0 0
  %427 = vmatpush1.bf16.msra.mxu0 %v313
  %428 = vmatprep.subr.bf16.mxu0 0
  %429 = vmatpush1.bf16.msra.mxu0 %v314
  %430 = vmatprep.subr.bf16.mxu0 0
  %431 = vmatpush1.bf16.msra.mxu0 %v315
  %432 = vmatprep.subr.bf16.mxu0 0
  %433 = vmatpush1.bf16.msra.mxu0 %v316
  %434 = vmatprep.subr.bf16.mxu0 0
  %435 = vmatpush1.bf16.msra.mxu0 %v317
  %436 = vmatprep.subr.bf16.mxu0 0
  %437 = vmatpush1.bf16.msra.mxu0 %v318
  %438 = vmatprep.subr.bf16.mxu0 0
  %439 = vmatpush1.bf16.msra.mxu0 %v319
  %440 = vmatprep.subr.bf16.mxu0 0
  %441 = vmatpush1.bf16.msra.mxu0 %v320
  %442 = vmatprep.subr.bf16.mxu0 0
  %443 = vmatpush1.bf16.msra.mxu0 %v321
  %444 = vmatprep.subr.bf16.mxu0 0
  %445 = vmatpush1.bf16.msra.mxu0 %v322
  %446 = vmatprep.subr.bf16.mxu0 0
  %447 = vmatpush1.bf16.msra.mxu0 %v323
  %448 = vmatprep.subr.bf16.mxu0 0
  %449 = vmatpush1.bf16.msra.mxu0 %v324
  %450 = vmatprep.subr.bf16.mxu0 0
  %451 = vmatpush1.bf16.msra.mxu0 %v325
  %452 = vmatprep.subr.bf16.mxu0 0
  %453 = vmatpush1.bf16.msra.mxu0 %v326
  %454 = vmatprep.subr.bf16.mxu0 0
  %455 = vmatpush1.bf16.msra.mxu0 %v327
  %456 = vmatprep.mubr.bf16.mxu0 %v137
  %457 = vmatmul.mubr.bf16.gmra.mrb[0].mxu0 %v136
  %v458 = vpop.f32.mrb[0].mxu0
  %v459 = vadd.f32 %v410, %v458
  %v460 = vpop.f32.mrb[0].mxu0
  %v461 = vpop.f32.mrb[0].mxu0
  %v462 = vadd.f32 %v413, %v461
  %v463 = vpop.f32.mrb[0].mxu0
  %464 = vmatprep.mubr.bf16.mxu0 %v142
  %465 = vmatmul.mubr.bf16.gmra.mrb[0].mxu0 %v141
  %v466 = vpop.f32.mrb[0].mxu0
  %v467 = vadd.f32 %v418, %v466
  %v468 = vpop.f32.mrb[0].mxu0
  %v469 = vpop.f32.mrb[0].mxu0
  %v470 = vadd.f32 %v421, %v469
  %v471 = vpop.f32.mrb[0].mxu0
  %472 = vdwg.mxu0
  %473 = vmatprep.subr.bf16.mxu0 0
  %474 = vmatpush1.bf16.msra.mxu0 %v328
  %475 = vmatprep.subr.bf16.mxu0 0
  %476 = vmatpush1.bf16.msra.mxu0 %v329
  %477 = vmatprep.subr.bf16.mxu0 0
  %478 = vmatpush1.bf16.msra.mxu0 %v330
  %479 = vmatprep.subr.bf16.mxu0 0
  %480 = vmatpush1.bf16.msra.mxu0 %v331
  %481 = vmatprep.subr.bf16.mxu0 0
  %482 = vmatpush1.bf16.msra.mxu0 0
  %483 = vmatprep.subr.bf16.mxu0 0
  %484 = vmatpush1.bf16.msra.mxu0 0
  %485 = vmatprep.subr.bf16.mxu0 0
  %486 = vmatpush1.bf16.msra.mxu0 0
  %487 = vmatprep.subr.bf16.mxu0 0
  %488 = vmatpush1.bf16.msra.mxu0 0
  %489 = vmatprep.subr.bf16.mxu0 0
  %490 = vmatpush1.bf16.msra.mxu0 0
  %491 = vmatprep.subr.bf16.mxu0 0
  %492 = vmatpush1.bf16.msra.mxu0 0
  %493 = vmatprep.subr.bf16.mxu0 0
  %494 = vmatpush1.bf16.msra.mxu0 0
  %495 = vmatprep.subr.bf16.mxu0 0
  %496 = vmatpush1.bf16.msra.mxu0 0
  %497 = vmatprep.subr.bf16.mxu0 0
  %498 = vmatpush1.bf16.msra.mxu0 0
  %499 = vmatprep.subr.bf16.mxu0 0
  %500 = vmatpush1.bf16.msra.mxu0 0
  %501 = vmatprep.subr.bf16.mxu0 0
  %502 = vmatpush1.bf16.msra.mxu0 0
  %503 = vmatprep.subr.bf16.mxu0 0
  %504 = vmatpush1.bf16.msra.mxu0 0
  %505 = vmatprep.mubr.bf16.mxu0 0
  %506 = vmatmul.mubr.bf16.gmra.mrb[0].mxu0 %v370
  %v507 = vpop.f32.mrb[0].mxu0
  %v508 = vadd.f32 %v459, %v507
  %v509 = vpop.f32.mrb[0].mxu0
  %v510 = vpop.f32.mrb[0].mxu0
  %v511 = vadd.f32 %v462, %v510
  %v512 = vpop.f32.mrb[0].mxu0
  %513 = vmatprep.mubr.bf16.mxu0 0
  %514 = vmatmul.mubr.bf16.gmra.mrb[0].mxu0 %v373
  %v515 = vpop.f32.mrb[0].mxu0
  %v516 = vadd.f32 %v467, %v515
  %v517 = vpop.f32.mrb[0].mxu0
  %v518 = vpop.f32.mrb[0].mxu0
  %v519 = vadd.f32 %v470, %v518
  %v520 = vpop.f32.mrb[0].mxu0
  %521 = vdwg.mxu0
  %v522 = vld [vmem:[%s2] sm:$0x1]
  %v524 = vlaneseq
  %v525 = vshrl.u32 %v524, 7
  %v526 = vsub.s32 0, %v525
  %v527 = vrot.slane %v522, %v526
  %v529 = vmul.f32 %v508, %v527
  %v530 = vmul.f32 %v511, %v527
  %v531 = vmul.f32 %v516, %v527
  %v532 = vmul.f32 %v519, %v527
  %v533 = vld [vmem:[%s3] sm:$0x1]
  %v535 = vlaneseq
  %v536 = vshrl.u32 %v535, 7
  %v537 = vsub.s32 0, %v536
  %v538 = vrot.slane %v533, %v537
  %v540 = vadd.f32 %v529, %v538
  %v541 = vadd.f32 %v530, %v538
  %v542 = vadd.f32 %v531, %v538
  %v543 = vadd.f32 %v532, %v538
  %v544 = vmax.f32 %v540, 0.0
  %v545 = vmax.f32 %v541, 0.0
  %v546 = vmax.f32 %v542, 0.0
  %v547 = vmax.f32 %v543, 0.0
  %548 = vst [vmem:[%s4] sm:$0xff] %v544
  %549 = vst [vmem:[%s4 + $0x8] sm:$0xff] %v545
  %550 = vst [vmem:[%s4 + $0x10] sm:$0xff] %v546
  %551 = vst [vmem:[%s4 + $0x18] sm:$0xff] %v547
  // Predicated region
  $region18: #{eye_classifier_forward.6} parent=0 // pred_check
    _
  $region19: #{eye_classifier_forward.6} parent=0 // pred_check_branch
    %553 = sbr.rel (0) target = $region21
  $region20: #{eye_classifier_forward.6} parent=0 // pred_region
    _
  $region21: #{eye_classifier_forward.6} parent=0 // pred_fallthru
    _
  // Predicated region
  $region22: #{eye_classifier_forward.6} parent=0 // pred_check
    _
  $region23: #{eye_classifier_forward.6} parent=0 // pred_check_branch
    %555 = sbr.rel (0) target = $region25
  $region24: #{eye_classifier_forward.6} parent=0 // pred_region
    _
  $region25: #{eye_classifier_forward.6} parent=0 // pred_fallthru
    _

// kernel: eye_classifier_forward.7
$region0: #{eye_classifier_forward.7}
  #allocation0 [shape = 'u32[]', space=smem, size = 0x4, offset = 0x4, fixed_abs, tag = 'smem constant byte address 0x4 - core index']
  #allocation1 [shape = 'u32[144,128]{1,0:T(1,128)}', space=vmem, size = 0x12000, scoped, tag = 'internal scratch']
  #allocation2 [shape = 'f32[1,1]{1,0:T(1,128)S(1)}', space=vmem, size = 0x200, scoped, tag = 'scoped memory for eye_classifier_forward.7']
  %s0 = inlined_call_operand.vmem [shape: bf16[2,1152], index: 0, kind: input, shape index: {}]
  %s1 = inlined_call_operand.vmem [shape: bf16[1152,256], index: 1, kind: input, shape index: {}]
  %s2 = inlined_call_operand.vmem [shape: f32[1,256], index: 2, kind: input, shape index: {}]
  %s3 = inlined_call_operand.vmem [shape: f32[1,256], index: 3, kind: input, shape index: {}]
  %s4 = inlined_call_operand.vmem [shape: f32[256,8], index: 4, kind: input, shape index: {}]
  %s5 = inlined_call_operand.vmem [shape: f32[1,8], index: 5, kind: input, shape index: {}]
  %s6 = inlined_call_operand.vmem [shape: f32[1,8], index: 6, kind: input, shape index: {}]
  %s7 = inlined_call_operand.<no memory space> [shape: f32[1,1], index: 7, kind: input, shape index: {}]
  %s8 = inlined_call_operand.vmem [shape: f32[2,1], index: 8, kind: output, shape index: {}]
  %s9 = sld [smem:[#allocation0]]
  $region42: #{eye_classifier_forward.7} parent=0
    _
  %s11 = ssub.s32 1, %s9
  %s12 = scalar_select 0, %s11, %s9
  %v13 = vstv %s7
  %14 = vst [vmem:[#allocation2] sm:$0x1] %v13
  // Predicated region
  $region2: #{eye_classifier_forward.7} parent=0 // pred_check
    _
  $region3: #{eye_classifier_forward.7} parent=0 // pred_check_branch
    %16 = sbr.rel (0) target = $region5
  $region4: #{eye_classifier_forward.7} parent=0 // pred_region
    _
  $region5: #{eye_classifier_forward.7} parent=0 // pred_fallthru
    _
  // Predicated region
  $region6: #{eye_classifier_forward.7} parent=0 // pred_check
    _
  $region7: #{eye_classifier_forward.7} parent=0 // pred_check_branch
    %18 = sbr.rel (0) target = $region9
  $region8: #{eye_classifier_forward.7} parent=0 // pred_region
    _
  $region9: #{eye_classifier_forward.7} parent=0 // pred_fallthru
    _
  // Predicated region
  $region10: #{eye_classifier_forward.7} parent=0 // pred_check
    _
  $region11: #{eye_classifier_forward.7} parent=0 // pred_check_branch
    %20 = sbr.rel (0) target = $region13
  $region12: #{eye_classifier_forward.7} parent=0 // pred_region
    _
  $region13: #{eye_classifier_forward.7} parent=0 // pred_fallthru
    _
  // Predicated region
  $region14: #{eye_classifier_forward.7} parent=0 // pred_check
    _
  $region15: #{eye_classifier_forward.7} parent=0 // pred_check_branch
    %22 = sbr.rel (0) target = $region17
  $region16: #{eye_classifier_forward.7} parent=0 // pred_region
    _
  $region17: #{eye_classifier_forward.7} parent=0 // pred_fallthru
    _
  // Predicated region
  $region18: #{eye_classifier_forward.7} parent=0 // pred_check
    _
  $region19: #{eye_classifier_forward.7} parent=0 // pred_check_branch
    %24 = sbr.rel (0) target = $region21
  $region20: #{eye_classifier_forward.7} parent=0 // pred_region
    _
  $region21: #{eye_classifier_forward.7} parent=0 // pred_fallthru
    _
  // Predicated region
  $region22: #{eye_classifier_forward.7} parent=0 // pred_check
    _
  $region23: #{eye_classifier_forward.7} parent=0 // pred_check_branch
    %26 = sbr.rel (0) target = $region25
  $region24: #{eye_classifier_forward.7} parent=0 // pred_region
    _
  $region25: #{eye_classifier_forward.7} parent=0 // pred_fallthru
    _
  // Predicated region
  $region26: #{eye_classifier_forward.7} parent=0 // pred_check
    _
  $region27: #{eye_classifier_forward.7} parent=0 // pred_check_branch
    %28 = sbr.rel (0) target = $region29
  $region28: #{eye_classifier_forward.7} parent=0 // pred_region
    _
  $region29: #{eye_classifier_forward.7} parent=0 // pred_fallthru
    _
  // Predicated region
  $region30: #{eye_classifier_forward.7} parent=0 // pred_check
    _
  $region31: #{eye_classifier_forward.7} parent=0 // pred_check_branch
    %30 = sbr.rel (0) target = $region33
  $region32: #{eye_classifier_forward.7} parent=0 // pred_region
    _
  $region33: #{eye_classifier_forward.7} parent=0 // pred_fallthru
    _
  %v32 = vld [vmem:[%s0] sm:$0xff]
  %v33 = vld [vmem:[%s0 + $0x8] sm:$0x1]
  %v34 = vld [vmem:[%s1] sm:$0xff]
  %v35 = vld [vmem:[%s1 + $0x8] sm:$0xff]
  %v36 = vld [vmem:[%s1 + $0x10] sm:$0xff]
  %v37 = vld [vmem:[%s1 + $0x18] sm:$0xff]
  %v38 = vld [vmem:[%s1 + $0x20] sm:$0xff]
  %v39 = vld [vmem:[%s1 + $0x28] sm:$0xff]
  %v40 = vld [vmem:[%s1 + $0x30] sm:$0xff]
  %v41 = vld [vmem:[%s1 + $0x38] sm:$0xff]
  %v42 = vld [vmem:[%s1 + $0x40] sm:$0xff]
  %v43 = vld [vmem:[%s1 + $0x48] sm:$0xff]
  %v44 = vld [vmem:[%s1 + $0x50] sm:$0xff]
  %v45 = vld [vmem:[%s1 + $0x58] sm:$0xff]
  %v46 = vld [vmem:[%s1 + $0x60] sm:$0xff]
  %v47 = vld [vmem:[%s1 + $0x68] sm:$0xff]
  %v48 = vld [vmem:[%s1 + $0x70] sm:$0xff]
  %v49 = vld [vmem:[%s1 + $0x78] sm:$0xff]
  %v50 = vld [vmem:[%s1 + $0x80] sm:$0xff]
  %v51 = vld [vmem:[%s1 + $0x88] sm:$0xff]
  %v52 = vld [vmem:[%s1 + $0x90] sm:$0xff]
  %v53 = vld [vmem:[%s1 + $0x98] sm:$0xff]
  %v54 = vld [vmem:[%s1 + $0xa0] sm:$0xff]
  %v55 = vld [vmem:[%s1 + $0xa8] sm:$0xff]
  %v56 = vld [vmem:[%s1 + $0xb0] sm:$0xff]
  %v57 = vld [vmem:[%s1 + $0xb8] sm:$0xff]
  %v58 = vld [vmem:[%s1 + $0xc0] sm:$0xff]
  %v59 = vld [vmem:[%s1 + $0xc8] sm:$0xff]
  %v60 = vld [vmem:[%s1 + $0xd0] sm:$0xff]
  %v61 = vld [vmem:[%s1 + $0xd8] sm:$0xff]
  %v62 = vld [vmem:[%s1 + $0xe0] sm:$0xff]
  %v63 = vld [vmem:[%s1 + $0xe8] sm:$0xff]
  %v64 = vld [vmem:[%s1 + $0xf0] sm:$0xff]
  %v65 = vld [vmem:[%s1 + $0xf8] sm:$0xff]
  %v66 = vld [vmem:[%s1 + $0x100] sm:$0xff]
  %v67 = vld [vmem:[%s1 + $0x108] sm:$0xff]
  %v68 = vld [vmem:[%s1 + $0x110] sm:$0xff]
  %v69 = vld [vmem:[%s1 + $0x118] sm:$0xff]
  %v70 = vld [vmem:[%s1 + $0x120] sm:$0xff]
  %v71 = vld [vmem:[%s1 + $0x128] sm:$0xff]
  %v72 = vld [vmem:[%s1 + $0x130] sm:$0xff]
  %v73 = vld [vmem:[%s1 + $0x138] sm:$0xff]
  %v74 = vld [vmem:[%s1 + $0x140] sm:$0xff]
  %v75 = vld [vmem:[%s1 + $0x148] sm:$0xff]
  %v76 = vld [vmem:[%s1 + $0x150] sm:$0xff]
  %v77 = vld [vmem:[%s1 + $0x158] sm:$0xff]
  %v78 = vld [vmem:[%s1 + $0x160] sm:$0xff]
  %v79 = vld [vmem:[%s1 + $0x168] sm:$0xff]
  %v80 = vld [vmem:[%s1 + $0x170] sm:$0xff]
  %v81 = vld [vmem:[%s1 + $0x178] sm:$0xff]
  %v82 = vld [vmem:[%s1 + $0x180] sm:$0xff]
  %v83 = vld [vmem:[%s1 + $0x188] sm:$0xff]
  %v84 = vld [vmem:[%s1 + $0x190] sm:$0xff]
  %v85 = vld [vmem:[%s1 + $0x198] sm:$0xff]
  %v86 = vld [vmem:[%s1 + $0x1a0] sm:$0xff]
  %v87 = vld [vmem:[%s1 + $0x1a8] sm:$0xff]
  %v88 = vld [vmem:[%s1 + $0x1b0] sm:$0xff]
  %v89 = vld [vmem:[%s1 + $0x1b8] sm:$0xff]
  %v90 = vld [vmem:[%s1 + $0x1c0] sm:$0xff]
  %v91 = vld [vmem:[%s1 + $0x1c8] sm:$0xff]
  %v92 = vld [vmem:[%s1 + $0x1d0] sm:$0xff]
  %v93 = vld [vmem:[%s1 + $0x1d8] sm:$0xff]
  %v94 = vld [vmem:[%s1 + $0x1e0] sm:$0xff]
  %v95 = vld [vmem:[%s1 + $0x1e8] sm:$0xff]
  %v96 = vld [vmem:[%s1 + $0x1f0] sm:$0xff]
  %v97 = vld [vmem:[%s1 + $0x1f8] sm:$0xff]
  %v98 = vld [vmem:[%s1 + $0x200] sm:$0xff]
  %v99 = vld [vmem:[%s1 + $0x208] sm:$0xff]
  %v100 = vld [vmem:[%s1 + $0x210] sm:$0xff]
  %v101 = vld [vmem:[%s1 + $0x218] sm:$0xff]
  %v102 = vld [vmem:[%s1 + $0x220] sm:$0xff]
  %v103 = vld [vmem:[%s1 + $0x228] sm:$0xff]
  %v104 = vld [vmem:[%s1 + $0x230] sm:$0xff]
  %v105 = vld [vmem:[%s1 + $0x238] sm:$0xff]
  %v106 = vld [vmem:[%s1 + $0x240] sm:$0xff]
  %v107 = vld [vmem:[%s1 + $0x248] sm:$0xff]
  %v108 = vld [vmem:[%s1 + $0x250] sm:$0xff]
  %v109 = vld [vmem:[%s1 + $0x258] sm:$0xff]
  %v110 = vld [vmem:[%s1 + $0x260] sm:$0xff]
  %v111 = vld [vmem:[%s1 + $0x268] sm:$0xff]
  %v112 = vld [vmem:[%s1 + $0x270] sm:$0xff]
  %v113 = vld [vmem:[%s1 + $0x278] sm:$0xff]
  %v114 = vld [vmem:[%s1 + $0x280] sm:$0xff]
  %v115 = vld [vmem:[%s1 + $0x288] sm:$0xff]
  %v116 = vld [vmem:[%s1 + $0x290] sm:$0xff]
  %v117 = vld [vmem:[%s1 + $0x298] sm:$0xff]
  %v118 = vld [vmem:[%s1 + $0x2a0] sm:$0xff]
  %v119 = vld [vmem:[%s1 + $0x2a8] sm:$0xff]
  %v120 = vld [vmem:[%s1 + $0x2b0] sm:$0xff]
  %v121 = vld [vmem:[%s1 + $0x2b8] sm:$0xff]
  %v122 = vld [vmem:[%s1 + $0x2c0] sm:$0xff]
  %v123 = vld [vmem:[%s1 + $0x2c8] sm:$0xff]
  %v124 = vld [vmem:[%s1 + $0x2d0] sm:$0xff]
  %v125 = vld [vmem:[%s1 + $0x2d8] sm:$0xff]
  %v126 = vld [vmem:[%s1 + $0x2e0] sm:$0xff]
  %v127 = vld [vmem:[%s1 + $0x2e8] sm:$0xff]
  %v128 = vld [vmem:[%s1 + $0x2f0] sm:$0xff]
  %v129 = vld [vmem:[%s1 + $0x2f8] sm:$0xff]
  %v130 = vld [vmem:[%s1 + $0x300] sm:$0xff]
  %v131 = vld [vmem:[%s1 + $0x308] sm:$0xff]
  %v132 = vld [vmem:[%s1 + $0x310] sm:$0xff]
  %v133 = vld [vmem:[%s1 + $0x318] sm:$0xff]
  %v134 = vld [vmem:[%s1 + $0x320] sm:$0xff]
  %v135 = vld [vmem:[%s1 + $0x328] sm:$0xff]
  %v136 = vld [vmem:[%s1 + $0x330] sm:$0xff]
  %v137 = vld [vmem:[%s1 + $0x338] sm:$0xff]
  %v138 = vld [vmem:[%s1 + $0x340] sm:$0xff]
  %v139 = vld [vmem:[%s1 + $0x348] sm:$0xff]
  %v140 = vld [vmem:[%s1 + $0x350] sm:$0xff]
  %v141 = vld [vmem:[%s1 + $0x358] sm:$0xff]
  %v142 = vld [vmem:[%s1 + $0x360] sm:$0xff]
  %v143 = vld [vmem:[%s1 + $0x368] sm:$0xff]
  %v144 = vld [vmem:[%s1 + $0x370] sm:$0xff]
  %v145 = vld [vmem:[%s1 + $0x378] sm:$0xff]
  %v146 = vld [vmem:[%s1 + $0x380] sm:$0xff]
  %v147 = vld [vmem:[%s1 + $0x388] sm:$0xff]
  %v148 = vld [vmem:[%s1 + $0x390] sm:$0xff]
  %v149 = vld [vmem:[%s1 + $0x398] sm:$0xff]
  %v150 = vld [vmem:[%s1 + $0x3a0] sm:$0xff]
  %v151 = vld [vmem:[%s1 + $0x3a8] sm:$0xff]
  %v152 = vld [vmem:[%s1 + $0x3b0] sm:$0xff]
  %v153 = vld [vmem:[%s1 + $0x3b8] sm:$0xff]
  %v154 = vld [vmem:[%s1 + $0x3c0] sm:$0xff]
  %v155 = vld [vmem:[%s1 + $0x3c8] sm:$0xff]
  %v156 = vld [vmem:[%s1 + $0x3d0] sm:$0xff]
  %v157 = vld [vmem:[%s1 + $0x3d8] sm:$0xff]
  %v158 = vld [vmem:[%s1 + $0x3e0] sm:$0xff]
  %v159 = vld [vmem:[%s1 + $0x3e8] sm:$0xff]
  %v160 = vld [vmem:[%s1 + $0x3f0] sm:$0xff]
  %v161 = vld [vmem:[%s1 + $0x3f8] sm:$0xff]
  %v162 = vld [vmem:[%s1 + $0x400] sm:$0xff]
  %v163 = vld [vmem:[%s1 + $0x408] sm:$0xff]
  %v164 = vld [vmem:[%s1 + $0x410] sm:$0xff]
  %v165 = vld [vmem:[%s1 + $0x418] sm:$0xff]
  %v166 = vld [vmem:[%s1 + $0x420] sm:$0xff]
  %v167 = vld [vmem:[%s1 + $0x428] sm:$0xff]
  %v168 = vld [vmem:[%s1 + $0x430] sm:$0xff]
  %v169 = vld [vmem:[%s1 + $0x438] sm:$0xff]
  %v170 = vld [vmem:[%s1 + $0x440] sm:$0xff]
  %v171 = vld [vmem:[%s1 + $0x448] sm:$0xff]
  %v172 = vld [vmem:[%s1 + $0x450] sm:$0xff]
  %v173 = vld [vmem:[%s1 + $0x458] sm:$0xff]
  %v174 = vld [vmem:[%s1 + $0x460] sm:$0xff]
  %v175 = vld [vmem:[%s1 + $0x468] sm:$0xff]
  %v176 = vld [vmem:[%s1 + $0x470] sm:$0xff]
  %v177 = vld [vmem:[%s1 + $0x478] sm:$0xff]
  %v180 = vcombine.high %v32, %v32
  %v182 = vunpack.c.l.s4 1966171168
  %v183 = vunpack.c.0.s8 %v182
  %v184 = vlaneseq
  %v185 = vshrl.u32 %v184, 7
  %v186 = vsub.s32 %v183, %v185
  %v187 = vrot.slane %v32, %v186
  %v189 = vunpack.c.l.s4 1966171168
  %v190 = vunpack.c.0.s8 %v189
  %v191 = vlaneseq
  %v192 = vshrl.u32 %v191, 7
  %v193 = vsub.s32 %v190, %v192
  %v194 = vrot.slane %v180, %v193
  %v195 = vcombine.high %v187, %v187
  %v196 = vcombine.high %v194, %v194
  %v198 = vunpack.c.l.s4 1966171168
  %v199 = vunpack.c.0.s8 %v198
  %v200 = vlaneseq
  %v201 = vshrl.u32 %v200, 7
  %v202 = vsub.s32 %v199, %v201
  %v203 = vrot.slane %v187, %v202
  %v205 = vunpack.c.l.s4 1966171168
  %v206 = vunpack.c.0.s8 %v205
  %v207 = vlaneseq
  %v208 = vshrl.u32 %v207, 7
  %v209 = vsub.s32 %v206, %v208
  %v210 = vrot.slane %v194, %v209
  %v212 = vunpack.c.l.s4 1966171168
  %v213 = vunpack.c.0.s8 %v212
  %v214 = vlaneseq
  %v215 = vshrl.u32 %v214, 7
  %v216 = vsub.s32 %v213, %v215
  %v217 = vrot.slane %v195, %v216
  %v219 = vunpack.c.l.s4 1966171168
  %v220 = vunpack.c.0.s8 %v219
  %v221 = vlaneseq
  %v222 = vshrl.u32 %v221, 7
  %v223 = vsub.s32 %v220, %v222
  %v224 = vrot.slane %v196, %v223
  %v225 = vcombine.high %v203, %v203
  %v226 = vcombine.high %v210, %v210
  %v227 = vcombine.high %v217, %v217
  %v228 = vcombine.high %v224, %v224
  %v230 = vunpack.c.l.s4 1966171168
  %v231 = vunpack.c.0.s8 %v230
  %v232 = vlaneseq
  %v233 = vshrl.u32 %v232, 7
  %v234 = vsub.s32 %v231, %v233
  %v235 = vrot.slane %v33, %v234
  %v237 = vunpack.c.l.s4 1966171168
  %v238 = vunpack.c.0.s8 %v237
  %v239 = vlaneseq
  %v240 = vshrl.u32 %v239, 7
  %v241 = vsub.s32 %v238, %v240
  %v242 = vrot.slane %v235, %v241
  %v396 = vunpack.c.l.b16 %v34
  %v397 = vunpack.c.h.b16 %v34
  %v398 = vunpack.c.l.b16 %v35
  %v399 = vunpack.c.h.b16 %v35
  %v400 = vunpack.c.l.b16 %v36
  %v401 = vunpack.c.h.b16 %v36
  %v402 = vunpack.c.l.b16 %v37
  %v403 = vunpack.c.h.b16 %v37
  %v404 = vunpack.c.l.b16 %v38
  %v405 = vunpack.c.h.b16 %v38
  %v406 = vunpack.c.l.b16 %v39
  %v407 = vunpack.c.h.b16 %v39
  %v408 = vunpack.c.l.b16 %v40
  %v409 = vunpack.c.h.b16 %v40
  %v410 = vunpack.c.l.b16 %v41
  %v411 = vunpack.c.h.b16 %v41
  %v412 = vunpack.c.l.b16 %v42
  %v413 = vunpack.c.h.b16 %v42
  %v414 = vunpack.c.l.b16 %v43
  %v415 = vunpack.c.h.b16 %v43
  %v416 = vunpack.c.l.b16 %v44
  %v417 = vunpack.c.h.b16 %v44
  %v418 = vunpack.c.l.b16 %v45
  %v419 = vunpack.c.h.b16 %v45
  %v420 = vunpack.c.l.b16 %v46
  %v421 = vunpack.c.h.b16 %v46
  %v422 = vunpack.c.l.b16 %v47
  %v423 = vunpack.c.h.b16 %v47
  %v424 = vunpack.c.l.b16 %v48
  %v425 = vunpack.c.h.b16 %v48
  %v426 = vunpack.c.l.b16 %v49
  %v427 = vunpack.c.h.b16 %v49
  %v428 = vunpack.c.l.b16 %v50
  %v429 = vunpack.c.h.b16 %v50
  %v430 = vunpack.c.l.b16 %v51
  %v431 = vunpack.c.h.b16 %v51
  %v432 = vunpack.c.l.b16 %v52
  %v433 = vunpack.c.h.b16 %v52
  %v434 = vunpack.c.l.b16 %v53
  %v435 = vunpack.c.h.b16 %v53
  %v436 = vunpack.c.l.b16 %v54
  %v437 = vunpack.c.h.b16 %v54
  %v438 = vunpack.c.l.b16 %v55
  %v439 = vunpack.c.h.b16 %v55
  %v440 = vunpack.c.l.b16 %v56
  %v441 = vunpack.c.h.b16 %v56
  %v442 = vunpack.c.l.b16 %v57
  %v443 = vunpack.c.h.b16 %v57
  %v444 = vunpack.c.l.b16 %v58
  %v445 = vunpack.c.h.b16 %v58
  %v446 = vunpack.c.l.b16 %v59
  %v447 = vunpack.c.h.b16 %v59
  %v448 = vunpack.c.l.b16 %v60
  %v449 = vunpack.c.h.b16 %v60
  %v450 = vunpack.c.l.b16 %v61
  %v451 = vunpack.c.h.b16 %v61
  %v452 = vunpack.c.l.b16 %v62
  %v453 = vunpack.c.h.b16 %v62
  %v454 = vunpack.c.l.b16 %v63
  %v455 = vunpack.c.h.b16 %v63
  %v456 = vunpack.c.l.b16 %v64
  %v457 = vunpack.c.h.b16 %v64
  %v458 = vunpack.c.l.b16 %v65
  %v459 = vunpack.c.h.b16 %v65
  %v460 = vunpack.c.l.b16 %v66
  %v461 = vunpack.c.h.b16 %v66
  %v462 = vunpack.c.l.b16 %v67
  %v463 = vunpack.c.h.b16 %v67
  %v464 = vunpack.c.l.b16 %v68
  %v465 = vunpack.c.h.b16 %v68
  %v466 = vunpack.c.l.b16 %v69
  %v467 = vunpack.c.h.b16 %v69
  %v468 = vunpack.c.l.b16 %v70
  %v469 = vunpack.c.h.b16 %v70
  %v470 = vunpack.c.l.b16 %v71
  %v471 = vunpack.c.h.b16 %v71
  %v472 = vunpack.c.l.b16 %v72
  %v473 = vunpack.c.h.b16 %v72
  %v474 = vunpack.c.l.b16 %v73
  %v475 = vunpack.c.h.b16 %v73
  %v476 = vunpack.c.l.b16 %v74
  %v477 = vunpack.c.h.b16 %v74
  %v478 = vunpack.c.l.b16 %v75
  %v479 = vunpack.c.h.b16 %v75
  %v480 = vunpack.c.l.b16 %v76
  %v481 = vunpack.c.h.b16 %v76
  %v482 = vunpack.c.l.b16 %v77
  %v483 = vunpack.c.h.b16 %v77
  %v484 = vunpack.c.l.b16 %v78
  %v485 = vunpack.c.h.b16 %v78
  %v486 = vunpack.c.l.b16 %v79
  %v487 = vunpack.c.h.b16 %v79
  %v488 = vunpack.c.l.b16 %v80
  %v489 = vunpack.c.h.b16 %v80
  %v490 = vunpack.c.l.b16 %v81
  %v491 = vunpack.c.h.b16 %v81
  %v492 = vunpack.c.l.b16 %v82
  %v493 = vunpack.c.h.b16 %v82
  %v494 = vunpack.c.l.b16 %v83
  %v495 = vunpack.c.h.b16 %v83
  %v496 = vunpack.c.l.b16 %v84
  %v497 = vunpack.c.h.b16 %v84
  %v498 = vunpack.c.l.b16 %v85
  %v499 = vunpack.c.h.b16 %v85
  %v500 = vunpack.c.l.b16 %v86
  %v501 = vunpack.c.h.b16 %v86
  %v502 = vunpack.c.l.b16 %v87
  %v503 = vunpack.c.h.b16 %v87
  %v504 = vunpack.c.l.b16 %v88
  %v505 = vunpack.c.h.b16 %v88
  %v506 = vunpack.c.l.b16 %v89
  %v507 = vunpack.c.h.b16 %v89
  %v508 = vunpack.c.l.b16 %v90
  %v509 = vunpack.c.h.b16 %v90
  %v510 = vunpack.c.l.b16 %v91
  %v511 = vunpack.c.h.b16 %v91
  %v512 = vunpack.c.l.b16 %v92
  %v513 = vunpack.c.h.b16 %v92
  %v514 = vunpack.c.l.b16 %v93
  %v515 = vunpack.c.h.b16 %v93
  %v516 = vunpack.c.l.b16 %v94
  %v517 = vunpack.c.h.b16 %v94
  %v518 = vunpack.c.l.b16 %v95
  %v519 = vunpack.c.h.b16 %v95
  %v520 = vunpack.c.l.b16 %v96
  %v521 = vunpack.c.h.b16 %v96
  %v522 = vunpack.c.l.b16 %v97
  %v523 = vunpack.c.h.b16 %v97
  %v524 = vunpack.c.l.b16 %v98
  %v525 = vunpack.c.h.b16 %v98
  %v526 = vunpack.c.l.b16 %v99
  %v527 = vunpack.c.h.b16 %v99
  %v528 = vunpack.c.l.b16 %v100
  %v529 = vunpack.c.h.b16 %v100
  %v530 = vunpack.c.l.b16 %v101
  %v531 = vunpack.c.h.b16 %v101
  %v532 = vunpack.c.l.b16 %v102
  %v533 = vunpack.c.h.b16 %v102
  %v534 = vunpack.c.l.b16 %v103
  %v535 = vunpack.c.h.b16 %v103
  %v536 = vunpack.c.l.b16 %v104
  %v537 = vunpack.c.h.b16 %v104
  %v538 = vunpack.c.l.b16 %v105
  %v539 = vunpack.c.h.b16 %v105
  %v540 = vunpack.c.l.b16 %v106
  %v541 = vunpack.c.h.b16 %v106
  %v542 = vunpack.c.l.b16 %v107
  %v543 = vunpack.c.h.b16 %v107
  %v544 = vunpack.c.l.b16 %v108
  %v545 = vunpack.c.h.b16 %v108
  %v546 = vunpack.c.l.b16 %v109
  %v547 = vunpack.c.h.b16 %v109
  %v548 = vunpack.c.l.b16 %v110
  %v549 = vunpack.c.h.b16 %v110
  %v550 = vunpack.c.l.b16 %v111
  %v551 = vunpack.c.h.b16 %v111
  %v552 = vunpack.c.l.b16 %v112
  %v553 = vunpack.c.h.b16 %v112
  %v554 = vunpack.c.l.b16 %v113
  %v555 = vunpack.c.h.b16 %v113
  %v556 = vunpack.c.l.b16 %v114
  %v557 = vunpack.c.h.b16 %v114
  %v558 = vunpack.c.l.b16 %v115
  %v559 = vunpack.c.h.b16 %v115
  %v560 = vunpack.c.l.b16 %v116
  %v561 = vunpack.c.h.b16 %v116
  %v562 = vunpack.c.l.b16 %v117
  %v563 = vunpack.c.h.b16 %v117
  %v564 = vunpack.c.l.b16 %v118
  %v565 = vunpack.c.h.b16 %v118
  %v566 = vunpack.c.l.b16 %v119
  %v567 = vunpack.c.h.b16 %v119
  %v568 = vunpack.c.l.b16 %v120
  %v569 = vunpack.c.h.b16 %v120
  %v570 = vunpack.c.l.b16 %v121
  %v571 = vunpack.c.h.b16 %v121
  %v572 = vunpack.c.l.b16 %v122
  %v573 = vunpack.c.h.b16 %v122
  %v574 = vunpack.c.l.b16 %v123
  %v575 = vunpack.c.h.b16 %v123
  %v576 = vunpack.c.l.b16 %v124
  %v577 = vunpack.c.h.b16 %v124
  %v578 = vunpack.c.l.b16 %v125
  %v579 = vunpack.c.h.b16 %v125
  %v580 = vunpack.c.l.b16 %v126
  %v581 = vunpack.c.h.b16 %v126
  %v582 = vunpack.c.l.b16 %v127
  %v583 = vunpack.c.h.b16 %v127
  %v584 = vunpack.c.l.b16 %v128
  %v585 = vunpack.c.h.b16 %v128
  %v586 = vunpack.c.l.b16 %v129
  %v587 = vunpack.c.h.b16 %v129
  %v588 = vunpack.c.l.b16 %v130
  %v589 = vunpack.c.h.b16 %v130
  %v590 = vunpack.c.l.b16 %v131
  %v591 = vunpack.c.h.b16 %v131
  %v592 = vunpack.c.l.b16 %v132
  %v593 = vunpack.c.h.b16 %v132
  %v594 = vunpack.c.l.b16 %v133
  %v595 = vunpack.c.h.b16 %v133
  %v596 = vunpack.c.l.b16 %v134
  %v597 = vunpack.c.h.b16 %v134
  %v598 = vunpack.c.l.b16 %v135
  %v599 = vunpack.c.h.b16 %v135
  %v600 = vunpack.c.l.b16 %v136
  %v601 = vunpack.c.h.b16 %v136
  %v602 = vunpack.c.l.b16 %v137
  %v603 = vunpack.c.h.b16 %v137
  %v604 = vunpack.c.l.b16 %v138
  %v605 = vunpack.c.h.b16 %v138
  %v606 = vunpack.c.l.b16 %v139
  %v607 = vunpack.c.h.b16 %v139
  %v608 = vunpack.c.l.b16 %v140
  %v609 = vunpack.c.h.b16 %v140
  %v610 = vunpack.c.l.b16 %v141
  %v611 = vunpack.c.h.b16 %v141
  %v612 = vunpack.c.l.b16 %v142
  %v613 = vunpack.c.h.b16 %v142
  %v614 = vunpack.c.l.b16 %v143
  %v615 = vunpack.c.h.b16 %v143
  %v616 = vunpack.c.l.b16 %v144
  %v617 = vunpack.c.h.b16 %v144
  %v618 = vunpack.c.l.b16 %v145
  %v619 = vunpack.c.h.b16 %v145
  %v620 = vunpack.c.l.b16 %v146
  %v621 = vunpack.c.h.b16 %v146
  %v622 = vunpack.c.l.b16 %v147
  %v623 = vunpack.c.h.b16 %v147
  %v624 = vunpack.c.l.b16 %v148
  %v625 = vunpack.c.h.b16 %v148
  %v626 = vunpack.c.l.b16 %v149
  %v627 = vunpack.c.h.b16 %v149
  %v628 = vunpack.c.l.b16 %v150
  %v629 = vunpack.c.h.b16 %v150
  %v630 = vunpack.c.l.b16 %v151
  %v631 = vunpack.c.h.b16 %v151
  %v632 = vunpack.c.l.b16 %v152
  %v633 = vunpack.c.h.b16 %v152
  %v634 = vunpack.c.l.b16 %v153
  %v635 = vunpack.c.h.b16 %v153
  %v636 = vunpack.c.l.b16 %v154
  %v637 = vunpack.c.h.b16 %v154
  %v638 = vunpack.c.l.b16 %v155
  %v639 = vunpack.c.h.b16 %v155
  %v640 = vunpack.c.l.b16 %v156
  %v641 = vunpack.c.h.b16 %v156
  %v642 = vunpack.c.l.b16 %v157
  %v643 = vunpack.c.h.b16 %v157
  %v644 = vunpack.c.l.b16 %v158
  %v645 = vunpack.c.h.b16 %v158
  %v646 = vunpack.c.l.b16 %v159
  %v647 = vunpack.c.h.b16 %v159
  %v648 = vunpack.c.l.b16 %v160
  %v649 = vunpack.c.h.b16 %v160
  %v650 = vunpack.c.l.b16 %v161
  %v651 = vunpack.c.h.b16 %v161
  %v652 = vunpack.c.l.b16 %v162
  %v653 = vunpack.c.h.b16 %v162
  %v654 = vunpack.c.l.b16 %v163
  %v655 = vunpack.c.h.b16 %v163
  %v656 = vunpack.c.l.b16 %v164
  %v657 = vunpack.c.h.b16 %v164
  %v658 = vunpack.c.l.b16 %v165
  %v659 = vunpack.c.h.b16 %v165
  %v660 = vunpack.c.l.b16 %v166
  %v661 = vunpack.c.h.b16 %v166
  %v662 = vunpack.c.l.b16 %v167
  %v663 = vunpack.c.h.b16 %v167
  %v664 = vunpack.c.l.b16 %v168
  %v665 = vunpack.c.h.b16 %v168
  %v666 = vunpack.c.l.b16 %v169
  %v667 = vunpack.c.h.b16 %v169
  %v668 = vunpack.c.l.b16 %v170
  %v669 = vunpack.c.h.b16 %v170
  %v670 = vunpack.c.l.b16 %v171
  %v671 = vunpack.c.h.b16 %v171
  %v672 = vunpack.c.l.b16 %v172
  %v673 = vunpack.c.h.b16 %v172
  %v674 = vunpack.c.l.b16 %v173
  %v675 = vunpack.c.h.b16 %v173
  %v676 = vunpack.c.l.b16 %v174
  %v677 = vunpack.c.h.b16 %v174
  %v678 = vunpack.c.l.b16 %v175
  %v679 = vunpack.c.h.b16 %v175
  %v680 = vunpack.c.l.b16 %v176
  %v681 = vunpack.c.h.b16 %v176
  %v682 = vunpack.c.l.b16 %v177
  %v683 = vunpack.c.h.b16 %v177
  %v684 = vpack.c.b16 %v398, %v396
  %v685 = vpack.c.b16 %v399, %v397
  %v686 = vpack.c.b16 %v402, %v400
  %v687 = vpack.c.b16 %v403, %v401
  %v688 = vpack.c.b16 %v406, %v404
  %v689 = vpack.c.b16 %v407, %v405
  %v690 = vpack.c.b16 %v410, %v408
  %v691 = vpack.c.b16 %v411, %v409
  %v692 = vpack.c.b16 %v414, %v412
  %v693 = vpack.c.b16 %v415, %v413
  %v694 = vpack.c.b16 %v418, %v416
  %v695 = vpack.c.b16 %v419, %v417
  %v696 = vpack.c.b16 %v422, %v420
  %v697 = vpack.c.b16 %v423, %v421
  %v698 = vpack.c.b16 %v426, %v424
  %v699 = vpack.c.b16 %v427, %v425
  %v700 = vpack.c.b16 %v430, %v428
  %v701 = vpack.c.b16 %v431, %v429
  %v702 = vpack.c.b16 %v434, %v432
  %v703 = vpack.c.b16 %v435, %v433
  %v704 = vpack.c.b16 %v438, %v436
  %v705 = vpack.c.b16 %v439, %v437
  %v706 = vpack.c.b16 %v442, %v440
  %v707 = vpack.c.b16 %v443, %v441
  %v708 = vpack.c.b16 %v446, %v444
  %v709 = vpack.c.b16 %v447, %v445
  %v710 = vpack.c.b16 %v450, %v448
  %v711 = vpack.c.b16 %v451, %v449
  %v712 = vpack.c.b16 %v454, %v452
  %v713 = vpack.c.b16 %v455, %v453
  %v714 = vpack.c.b16 %v458, %v456
  %v715 = vpack.c.b16 %v459, %v457
  %v716 = vpack.c.b16 %v462, %v460
  %v717 = vpack.c.b16 %v463, %v461
  %v718 = vpack.c.b16 %v466, %v464
  %v719 = vpack.c.b16 %v467, %v465
  %v720 = vpack.c.b16 %v470, %v468
  %v721 = vpack.c.b16 %v471, %v469
  %v722 = vpack.c.b16 %v474, %v472
  %v723 = vpack.c.b16 %v475, %v473
  %v724 = vpack.c.b16 %v478, %v476
  %v725 = vpack.c.b16 %v479, %v477
  %v726 = vpack.c.b16 %v482, %v480
  %v727 = vpack.c.b16 %v483, %v481
  %v728 = vpack.c.b16 %v486, %v484
  %v729 = vpack.c.b16 %v487, %v485
  %v730 = vpack.c.b16 %v490, %v488
  %v731 = vpack.c.b16 %v491, %v489
  %v732 = vpack.c.b16 %v494, %v492
  %v733 = vpack.c.b16 %v495, %v493
  %v734 = vpack.c.b16 %v498, %v496
  %v735 = vpack.c.b16 %v499, %v497
  %v736 = vpack.c.b16 %v502, %v500
  %v737 = vpack.c.b16 %v503, %v501
  %v738 = vpack.c.b16 %v506, %v504
  %v739 = vpack.c.b16 %v507, %v505
  %v740 = vpack.c.b16 %v510, %v508
  %v741 = vpack.c.b16 %v511, %v509
  %v742 = vpack.c.b16 %v514, %v512
  %v743 = vpack.c.b16 %v515, %v513
  %v744 = vpack.c.b16 %v518, %v516
  %v745 = vpack.c.b16 %v519, %v517
  %v746 = vpack.c.b16 %v522, %v520
  %v747 = vpack.c.b16 %v523, %v521
  %v748 = vpack.c.b16 %v526, %v524
  %v749 = vpack.c.b16 %v527, %v525
  %v750 = vpack.c.b16 %v530, %v528
  %v751 = vpack.c.b16 %v531, %v529
  %v752 = vpack.c.b16 %v534, %v532
  %v753 = vpack.c.b16 %v535, %v533
  %v754 = vpack.c.b16 %v538, %v536
  %v755 = vpack.c.b16 %v539, %v537
  %v756 = vpack.c.b16 %v542, %v540
  %v757 = vpack.c.b16 %v543, %v541
  %v758 = vpack.c.b16 %v546, %v544
  %v759 = vpack.c.b16 %v547, %v545
  %v760 = vpack.c.b16 %v550, %v548
  %v761 = vpack.c.b16 %v551, %v549
  %v762 = vpack.c.b16 %v554, %v552
  %v763 = vpack.c.b16 %v555, %v553
  %v764 = vpack.c.b16 %v558, %v556
  %v765 = vpack.c.b16 %v559, %v557
  %v766 = vpack.c.b16 %v562, %v560
  %v767 = vpack.c.b16 %v563, %v561
  %v768 = vpack.c.b16 %v566, %v564
  %v769 = vpack.c.b16 %v567, %v565
  %v770 = vpack.c.b16 %v570, %v568
  %v771 = vpack.c.b16 %v571, %v569
  %v772 = vpack.c.b16 %v574, %v572
  %v773 = vpack.c.b16 %v575, %v573
  %v774 = vpack.c.b16 %v578, %v576
  %v775 = vpack.c.b16 %v579, %v577
  %v776 = vpack.c.b16 %v582, %v580
  %v777 = vpack.c.b16 %v583, %v581
  %v778 = vpack.c.b16 %v586, %v584
  %v779 = vpack.c.b16 %v587, %v585
  %v780 = vpack.c.b16 %v590, %v588
  %v781 = vpack.c.b16 %v591, %v589
  %v782 = vpack.c.b16 %v594, %v592
  %v783 = vpack.c.b16 %v595, %v593
  %v784 = vpack.c.b16 %v598, %v596
  %v785 = vpack.c.b16 %v599, %v597
  %v786 = vpack.c.b16 %v602, %v600
  %v787 = vpack.c.b16 %v603, %v601
  %v788 = vpack.c.b16 %v606, %v604
  %v789 = vpack.c.b16 %v607, %v605
  %v790 = vpack.c.b16 %v610, %v608
  %v791 = vpack.c.b16 %v611, %v609
  %v792 = vpack.c.b16 %v614, %v612
  %v793 = vpack.c.b16 %v615, %v613
  %v794 = vpack.c.b16 %v618, %v616
  %v795 = vpack.c.b16 %v619, %v617
  %v796 = vpack.c.b16 %v622, %v620
  %v797 = vpack.c.b16 %v623, %v621
  %v798 = vpack.c.b16 %v626, %v624
  %v799 = vpack.c.b16 %v627, %v625
  %v800 = vpack.c.b16 %v630, %v628
  %v801 = vpack.c.b16 %v631, %v629
  %v802 = vpack.c.b16 %v634, %v632
  %v803 = vpack.c.b16 %v635, %v633
  %v804 = vpack.c.b16 %v638, %v636
  %v805 = vpack.c.b16 %v639, %v637
  %v806 = vpack.c.b16 %v642, %v640
  %v807 = vpack.c.b16 %v643, %v641
  %v808 = vpack.c.b16 %v646, %v644
  %v809 = vpack.c.b16 %v647, %v645
  %v810 = vpack.c.b16 %v650, %v648
  %v811 = vpack.c.b16 %v651, %v649
  %v812 = vpack.c.b16 %v654, %v652
  %v813 = vpack.c.b16 %v655, %v653
  %v814 = vpack.c.b16 %v658, %v656
  %v815 = vpack.c.b16 %v659, %v657
  %v816 = vpack.c.b16 %v662, %v660
  %v817 = vpack.c.b16 %v663, %v661
  %v818 = vpack.c.b16 %v666, %v664
  %v819 = vpack.c.b16 %v667, %v665
  %v820 = vpack.c.b16 %v670, %v668
  %v821 = vpack.c.b16 %v671, %v669
  %v822 = vpack.c.b16 %v674, %v672
  %v823 = vpack.c.b16 %v675, %v673
  %v824 = vpack.c.b16 %v678, %v676
  %v825 = vpack.c.b16 %v679, %v677
  %v826 = vpack.c.b16 %v682, %v680
  %v827 = vpack.c.b16 %v683, %v681
  %972 = vmatprep.subr.bf16.mxu0 %v685
  %973 = vmatpush1.bf16.msra.mxu0 %v684
  %974 = vmatprep.subr.bf16.mxu0 %v687
  %975 = vmatpush1.bf16.msra.mxu0 %v686
  %976 = vmatprep.subr.bf16.mxu0 %v689
  %977 = vmatpush1.bf16.msra.mxu0 %v688
  %978 = vmatprep.subr.bf16.mxu0 %v691
  %979 = vmatpush1.bf16.msra.mxu0 %v690
  %980 = vmatprep.subr.bf16.mxu0 %v693
  %981 = vmatpush1.bf16.msra.mxu0 %v692
  %982 = vmatprep.subr.bf16.mxu0 %v695
  %983 = vmatpush1.bf16.msra.mxu0 %v694
  %984 = vmatprep.subr.bf16.mxu0 %v697
  %985 = vmatpush1.bf16.msra.mxu0 %v696
  %986 = vmatprep.subr.bf16.mxu0 %v699
  %987 = vmatpush1.bf16.msra.mxu0 %v698
  %988 = vmatprep.subr.bf16.mxu0 %v701
  %989 = vmatpush1.bf16.msra.mxu0 %v700
  %990 = vmatprep.subr.bf16.mxu0 %v703
  %991 = vmatpush1.bf16.msra.mxu0 %v702
  %992 = vmatprep.subr.bf16.mxu0 %v705
  %993 = vmatpush1.bf16.msra.mxu0 %v704
  %994 = vmatprep.subr.bf16.mxu0 %v707
  %995 = vmatpush1.bf16.msra.mxu0 %v706
  %996 = vmatprep.subr.bf16.mxu0 %v709
  %997 = vmatpush1.bf16.msra.mxu0 %v708
  %998 = vmatprep.subr.bf16.mxu0 %v711
  %999 = vmatpush1.bf16.msra.mxu0 %v710
  %1000 = vmatprep.subr.bf16.mxu0 %v713
  %1001 = vmatpush1.bf16.msra.mxu0 %v712
  %1002 = vmatprep.subr.bf16.mxu0 %v715
  %1003 = vmatpush1.bf16.msra.mxu0 %v714
  %1004 = vmatprep.mubr.bf16.mxu0 %v217
  %1005 = vmatmul.mubr.bf16.gmra.mrb[0].mxu0 %v203
  %v1006 = vpop.f32.mrb[0].mxu0
  %v1007 = vadd.f32 0.0, %v1006
  %v1008 = vpop.f32.mrb[0].mxu0
  %v1009 = vadd.f32 0.0, %v1008
  %v1010 = vpop.f32.mrb[0].mxu0
  %v1011 = vpop.f32.mrb[0].mxu0
  %1012 = vdwg.mxu0
  %1013 = vmatprep.subr.bf16.mxu0 %v717
  %1014 = vmatpush1.bf16.msra.mxu0 %v716
  %1015 = vmatprep.subr.bf16.mxu0 %v719
  %1016 = vmatpush1.bf16.msra.mxu0 %v718
  %1017 = vmatprep.subr.bf16.mxu0 %v721
  %1018 = vmatpush1.bf16.msra.mxu0 %v720
  %1019 = vmatprep.subr.bf16.mxu0 %v723
  %1020 = vmatpush1.bf16.msra.mxu0 %v722
  %1021 = vmatprep.subr.bf16.mxu0 %v725
  %1022 = vmatpush1.bf16.msra.mxu0 %v724
  %1023 = vmatprep.subr.bf16.mxu0 %v727
  %1024 = vmatpush1.bf16.msra.mxu0 %v726
  %1025 = vmatprep.subr.bf16.mxu0 %v729
  %1026 = vmatpush1.bf16.msra.mxu0 %v728
  %1027 = vmatprep.subr.bf16.mxu0 %v731
  %1028 = vmatpush1.bf16.msra.mxu0 %v730
  %1029 = vmatprep.subr.bf16.mxu0 %v733
  %1030 = vmatpush1.bf16.msra.mxu0 %v732
  %1031 = vmatprep.subr.bf16.mxu0 %v735
  %1032 = vmatpush1.bf16.msra.mxu0 %v734
  %1033 = vmatprep.subr.bf16.mxu0 %v737
  %1034 = vmatpush1.bf16.msra.mxu0 %v736
  %1035 = vmatprep.subr.bf16.mxu0 %v739
  %1036 = vmatpush1.bf16.msra.mxu0 %v738
  %1037 = vmatprep.subr.bf16.mxu0 %v741
  %1038 = vmatpush1.bf16.msra.mxu0 %v740
  %1039 = vmatprep.subr.bf16.mxu0 %v743
  %1040 = vmatpush1.bf16.msra.mxu0 %v742
  %1041 = vmatprep.subr.bf16.mxu0 %v745
  %1042 = vmatpush1.bf16.msra.mxu0 %v744
  %1043 = vmatprep.subr.bf16.mxu0 %v747
  %1044 = vmatpush1.bf16.msra.mxu0 %v746
  %1045 = vmatprep.mubr.bf16.mxu0 %v227
  %1046 = vmatmul.mubr.bf16.gmra.mrb[0].mxu0 %v225
  %v1047 = vpop.f32.mrb[0].mxu0
  %v1048 = vadd.f32 %v1007, %v1047
  %v1049 = vpop.f32.mrb[0].mxu0
  %v1050 = vadd.f32 %v1009, %v1049
  %v1051 = vpop.f32.mrb[0].mxu0
  %v1052 = vpop.f32.mrb[0].mxu0
  %1053 = vdwg.mxu0
  %1054 = vmatprep.subr.bf16.mxu0 %v749
  %1055 = vmatpush1.bf16.msra.mxu0 %v748
  %1056 = vmatprep.subr.bf16.mxu0 %v751
  %1057 = vmatpush1.bf16.msra.mxu0 %v750
  %1058 = vmatprep.subr.bf16.mxu0 %v753
  %1059 = vmatpush1.bf16.msra.mxu0 %v752
  %1060 = vmatprep.subr.bf16.mxu0 %v755
  %1061 = vmatpush1.bf16.msra.mxu0 %v754
  %1062 = vmatprep.subr.bf16.mxu0 %v757
  %1063 = vmatpush1.bf16.msra.mxu0 %v756
  %1064 = vmatprep.subr.bf16.mxu0 %v759
  %1065 = vmatpush1.bf16.msra.mxu0 %v758
  %1066 = vmatprep.subr.bf16.mxu0 %v761
  %1067 = vmatpush1.bf16.msra.mxu0 %v760
  %1068 = vmatprep.subr.bf16.mxu0 %v763
  %1069 = vmatpush1.bf16.msra.mxu0 %v762
  %1070 = vmatprep.subr.bf16.mxu0 %v765
  %1071 = vmatpush1.bf16.msra.mxu0 %v764
  %1072 = vmatprep.subr.bf16.mxu0 %v767
  %1073 = vmatpush1.bf16.msra.mxu0 %v766
  %1074 = vmatprep.subr.bf16.mxu0 %v769
  %1075 = vmatpush1.bf16.msra.mxu0 %v768
  %1076 = vmatprep.subr.bf16.mxu0 %v771
  %1077 = vmatpush1.bf16.msra.mxu0 %v770
  %1078 = vmatprep.subr.bf16.mxu0 %v773
  %1079 = vmatpush1.bf16.msra.mxu0 %v772
  %1080 = vmatprep.subr.bf16.mxu0 %v775
  %1081 = vmatpush1.bf16.msra.mxu0 %v774
  %1082 = vmatprep.subr.bf16.mxu0 %v777
  %1083 = vmatpush1.bf16.msra.mxu0 %v776
  %1084 = vmatprep.subr.bf16.mxu0 %v779
  %1085 = vmatpush1.bf16.msra.mxu0 %v778
  %1086 = vmatprep.mubr.bf16.mxu0 %v224
  %1087 = vmatmul.mubr.bf16.gmra.mrb[0].mxu0 %v210
  %v1088 = vpop.f32.mrb[0].mxu0
  %v1089 = vadd.f32 %v1048, %v1088
  %v1090 = vpop.f32.mrb[0].mxu0
  %v1091 = vadd.f32 %v1050, %v1090
  %v1092 = vpop.f32.mrb[0].mxu0
  %v1093 = vpop.f32.mrb[0].mxu0
  %1094 = vdwg.mxu0
  %1095 = vmatprep.subr.bf16.mxu0 %v781
  %1096 = vmatpush1.bf16.msra.mxu0 %v780
  %1097 = vmatprep.subr.bf16.mxu0 %v783
  %1098 = vmatpush1.bf16.msra.mxu0 %v782
  %1099 = vmatprep.subr.bf16.mxu0 %v785
  %1100 = vmatpush1.bf16.msra.mxu0 %v784
  %1101 = vmatprep.subr.bf16.mxu0 %v787
  %1102 = vmatpush1.bf16.msra.mxu0 %v786
  %1103 = vmatprep.subr.bf16.mxu0 %v789
  %1104 = vmatpush1.bf16.msra.mxu0 %v788
  %1105 = vmatprep.subr.bf16.mxu0 %v791
  %1106 = vmatpush1.bf16.msra.mxu0 %v790
  %1107 = vmatprep.subr.bf16.mxu0 %v793
  %1108 = vmatpush1.bf16.msra.mxu0 %v792
  %1109 = vmatprep.subr.bf16.mxu0 %v795
  %1110 = vmatpush1.bf16.msra.mxu0 %v794
  %1111 = vmatprep.subr.bf16.mxu0 %v797
  %1112 = vmatpush1.bf16.msra.mxu0 %v796
  %1113 = vmatprep.subr.bf16.mxu0 %v799
  %1114 = vmatpush1.bf16.msra.mxu0 %v798
  %1115 = vmatprep.subr.bf16.mxu0 %v801
  %1116 = vmatpush1.bf16.msra.mxu0 %v800
  %1117 = vmatprep.subr.bf16.mxu0 %v803
  %1118 = vmatpush1.bf16.msra.mxu0 %v802
  %1119 = vmatprep.subr.bf16.mxu0 %v805
  %1120 = vmatpush1.bf16.msra.mxu0 %v804
  %1121 = vmatprep.subr.bf16.mxu0 %v807
  %1122 = vmatpush1.bf16.msra.mxu0 %v806
  %1123 = vmatprep.subr.bf16.mxu0 %v809
  %1124 = vmatpush1.bf16.msra.mxu0 %v808
  %1125 = vmatprep.subr.bf16.mxu0 %v811
  %1126 = vmatpush1.bf16.msra.mxu0 %v810
  %1127 = vmatprep.mubr.bf16.mxu0 %v228
  %1128 = vmatmul.mubr.bf16.gmra.mrb[0].mxu0 %v226
  %v1129 = vpop.f32.mrb[0].mxu0
  %v1130 = vadd.f32 %v1089, %v1129
  %v1131 = vpop.f32.mrb[0].mxu0
  %v1132 = vadd.f32 %v1091, %v1131
  %v1133 = vpop.f32.mrb[0].mxu0
  %v1134 = vpop.f32.mrb[0].mxu0
  %1135 = vdwg.mxu0
  %1136 = vmatprep.subr.bf16.mxu0 %v813
  %1137 = vmatpush1.bf16.msra.mxu0 %v812
  %1138 = vmatprep.subr.bf16.mxu0 %v815
  %1139 = vmatpush1.bf16.msra.mxu0 %v814
  %1140 = vmatprep.subr.bf16.mxu0 %v817
  %1141 = vmatpush1.bf16.msra.mxu0 %v816
  %1142 = vmatprep.subr.bf16.mxu0 %v819
  %1143 = vmatpush1.bf16.msra.mxu0 %v818
  %1144 = vmatprep.subr.bf16.mxu0 %v821
  %1145 = vmatpush1.bf16.msra.mxu0 %v820
  %1146 = vmatprep.subr.bf16.mxu0 %v823
  %1147 = vmatpush1.bf16.msra.mxu0 %v822
  %1148 = vmatprep.subr.bf16.mxu0 %v825
  %1149 = vmatpush1.bf16.msra.mxu0 %v824
  %1150 = vmatprep.subr.bf16.mxu0 %v827
  %1151 = vmatpush1.bf16.msra.mxu0 %v826
  %1152 = vmatprep.subr.bf16.mxu0 0
  %1153 = vmatpush1.bf16.msra.mxu0 0
  %1154 = vmatprep.subr.bf16.mxu0 0
  %1155 = vmatpush1.bf16.msra.mxu0 0
  %1156 = vmatprep.subr.bf16.mxu0 0
  %1157 = vmatpush1.bf16.msra.mxu0 0
  %1158 = vmatprep.subr.bf16.mxu0 0
  %1159 = vmatpush1.bf16.msra.mxu0 0
  %1160 = vmatprep.subr.bf16.mxu0 0
  %1161 = vmatpush1.bf16.msra.mxu0 0
  %1162 = vmatprep.subr.bf16.mxu0 0
  %1163 = vmatpush1.bf16.msra.mxu0 0
  %1164 = vmatprep.subr.bf16.mxu0 0
  %1165 = vmatpush1.bf16.msra.mxu0 0
  %1166 = vmatprep.subr.bf16.mxu0 0
  %1167 = vmatpush1.bf16.msra.mxu0 0
  %1168 = vmatprep.mubr.bf16.mxu0 0
  %1169 = vmatmul.mubr.bf16.gmra.mrb[0].mxu0 %v242
  %v1170 = vpop.f32.mrb[0].mxu0
  %v1171 = vadd.f32 %v1130, %v1170
  %v1172 = vpop.f32.mrb[0].mxu0
  %v1173 = vadd.f32 %v1132, %v1172
  %v1174 = vpop.f32.mrb[0].mxu0
  %v1175 = vpop.f32.mrb[0].mxu0
  %1176 = vdwg.mxu0
  %v1177 = vld [vmem:[%s2] sm:$0x3]
  %v1179 = vlaneseq
  %v1180 = vshrl.u32 %v1179, 7
  %v1181 = vsub.s32 0, %v1180
  %v1182 = vrot.slane %v1177, %v1181
  %v1183 = vlaneseq
  %v1184 = vshrl.u32 %v1183, 7
  %v1185 = vsub.s32 1, %v1184
  %v1186 = vrot.slane %v1177, %v1185
  %v1189 = vmul.f32 %v1171, %v1182
  %v1190 = vmul.f32 %v1173, %v1186
  %v1191 = vld [vmem:[%s3] sm:$0x3]
  %v1193 = vlaneseq
  %v1194 = vshrl.u32 %v1193, 7
  %v1195 = vsub.s32 0, %v1194
  %v1196 = vrot.slane %v1191, %v1195
  %v1197 = vlaneseq
  %v1198 = vshrl.u32 %v1197, 7
  %v1199 = vsub.s32 1, %v1198
  %v1200 = vrot.slane %v1191, %v1199
  %v1203 = vadd.f32 %v1189, %v1196
  %v1204 = vadd.f32 %v1190, %v1200
  %v1205 = vmax.f32 %v1203, 0.0
  %v1206 = vmax.f32 %v1204, 0.0
  %v1207 = vld [vmem:[%s4] sm:$0xff]
  %v1208 = vld [vmem:[%s4 + $0x8] sm:$0xff]
  %v1209 = vld [vmem:[%s4 + $0x10] sm:$0xff]
  %v1210 = vld [vmem:[%s4 + $0x18] sm:$0xff]
  %v1211 = vld [vmem:[%s4 + $0x20] sm:$0xff]
  %v1212 = vld [vmem:[%s4 + $0x28] sm:$0xff]
  %v1213 = vld [vmem:[%s4 + $0x30] sm:$0xff]
  %v1214 = vld [vmem:[%s4 + $0x38] sm:$0xff]
  %v1215 = vld [vmem:[%s4 + $0x40] sm:$0xff]
  %v1216 = vld [vmem:[%s4 + $0x48] sm:$0xff]
  %v1217 = vld [vmem:[%s4 + $0x50] sm:$0xff]
  %v1218 = vld [vmem:[%s4 + $0x58] sm:$0xff]
  %v1219 = vld [vmem:[%s4 + $0x60] sm:$0xff]
  %v1220 = vld [vmem:[%s4 + $0x68] sm:$0xff]
  %v1221 = vld [vmem:[%s4 + $0x70] sm:$0xff]
  %v1222 = vld [vmem:[%s4 + $0x78] sm:$0xff]
  %v1223 = vld [vmem:[%s4 + $0x80] sm:$0xff]
  %v1224 = vld [vmem:[%s4 + $0x88] sm:$0xff]
  %v1225 = vld [vmem:[%s4 + $0x90] sm:$0xff]
  %v1226 = vld [vmem:[%s4 + $0x98] sm:$0xff]
  %v1227 = vld [vmem:[%s4 + $0xa0] sm:$0xff]
  %v1228 = vld [vmem:[%s4 + $0xa8] sm:$0xff]
  %v1229 = vld [vmem:[%s4 + $0xb0] sm:$0xff]
  %v1230 = vld [vmem:[%s4 + $0xb8] sm:$0xff]
  %v1231 = vld [vmem:[%s4 + $0xc0] sm:$0xff]
  %v1232 = vld [vmem:[%s4 + $0xc8] sm:$0xff]
  %v1233 = vld [vmem:[%s4 + $0xd0] sm:$0xff]
  %v1234 = vld [vmem:[%s4 + $0xd8] sm:$0xff]
  %v1235 = vld [vmem:[%s4 + $0xe0] sm:$0xff]
  %v1236 = vld [vmem:[%s4 + $0xe8] sm:$0xff]
  %v1237 = vld [vmem:[%s4 + $0xf0] sm:$0xff]
  %v1238 = vld [vmem:[%s4 + $0xf8] sm:$0xff]
  %v1239 = vld [vmem:[%s5] sm:$0x1]
  %v1241 = vlaneseq
  %v1242 = vshrl.u32 %v1241, 7
  %v1243 = vsub.s32 0, %v1242
  %v1244 = vrot.slane %v1239, %v1243
  %1246 = vmatprep.subr.mxu0 0.0
  %1247 = vmatpush1.msra.mxu0 %v1207
  %1248 = vmatprep.subr.mxu0 0.0
  %1249 = vmatpush1.msra.mxu0 %v1208
  %1250 = vmatprep.subr.mxu0 0.0
  %1251 = vmatpush1.msra.mxu0 %v1209
  %1252 = vmatprep.subr.mxu0 0.0
  %1253 = vmatpush1.msra.mxu0 %v1210
  %1254 = vmatprep.subr.mxu0 0.0
  %1255 = vmatpush1.msra.mxu0 %v1211
  %1256 = vmatprep.subr.mxu0 0.0
  %1257 = vmatpush1.msra.mxu0 %v1212
  %1258 = vmatprep.subr.mxu0 0.0
  %1259 = vmatpush1.msra.mxu0 %v1213
  %1260 = vmatprep.subr.mxu0 0.0
  %1261 = vmatpush1.msra.mxu0 %v1214
  %1262 = vmatprep.subr.mxu0 0.0
  %1263 = vmatpush1.msra.mxu0 %v1215
  %1264 = vmatprep.subr.mxu0 0.0
  %1265 = vmatpush1.msra.mxu0 %v1216
  %1266 = vmatprep.subr.mxu0 0.0
  %1267 = vmatpush1.msra.mxu0 %v1217
  %1268 = vmatprep.subr.mxu0 0.0
  %1269 = vmatpush1.msra.mxu0 %v1218
  %1270 = vmatprep.subr.mxu0 0.0
  %1271 = vmatpush1.msra.mxu0 %v1219
  %1272 = vmatprep.subr.mxu0 0.0
  %1273 = vmatpush1.msra.mxu0 %v1220
  %1274 = vmatprep.subr.mxu0 0.0
  %1275 = vmatpush1.msra.mxu0 %v1221
  %1276 = vmatprep.subr.mxu0 0.0
  %1277 = vmatpush1.msra.mxu0 %v1222
  %1278 = vmatprep.subr.mxu0 0.0
  %1279 = vmatpush1.msra.mxu0 %v1223
  %1280 = vmatprep.subr.mxu0 0.0
  %1281 = vmatpush1.msra.mxu0 %v1224
  %1282 = vmatprep.subr.mxu0 0.0
  %1283 = vmatpush1.msra.mxu0 %v1225
  %1284 = vmatprep.subr.mxu0 0.0
  %1285 = vmatpush1.msra.mxu0 %v1226
  %1286 = vmatprep.subr.mxu0 0.0
  %1287 = vmatpush1.msra.mxu0 %v1227
  %1288 = vmatprep.subr.mxu0 0.0
  %1289 = vmatpush1.msra.mxu0 %v1228
  %1290 = vmatprep.subr.mxu0 0.0
  %1291 = vmatpush1.msra.mxu0 %v1229
  %1292 = vmatprep.subr.mxu0 0.0
  %1293 = vmatpush1.msra.mxu0 %v1230
  %1294 = vmatprep.subr.mxu0 0.0
  %1295 = vmatpush1.msra.mxu0 %v1231
  %1296 = vmatprep.subr.mxu0 0.0
  %1297 = vmatpush1.msra.mxu0 %v1232
  %1298 = vmatprep.subr.mxu0 0.0
  %1299 = vmatpush1.msra.mxu0 %v1233
  %1300 = vmatprep.subr.mxu0 0.0
  %1301 = vmatpush1.msra.mxu0 %v1234
  %1302 = vmatprep.subr.mxu0 0.0
  %1303 = vmatpush1.msra.mxu0 %v1235
  %1304 = vmatprep.subr.mxu0 0.0
  %1305 = vmatpush1.msra.mxu0 %v1236
  %1306 = vmatprep.subr.mxu0 0.0
  %1307 = vmatpush1.msra.mxu0 %v1237
  %1308 = vmatprep.subr.mxu0 0.0
  %1309 = vmatpush1.msra.mxu0 %v1238
  %1310 = vmatprep.mubr.f32.mxu0 %v1206
  %1311 = vmatmul.mubr.f32.gmra.mrb[0].mxu0 %v1205
  %v1312 = vpop.f32.mrb[0].mxu0
  %v1313 = vadd.f32 %v1244, %v1312
  %v1314 = vpop.f32.mrb[0].mxu0
  %1315 = vdwg.mxu0
  %v1316 = vld [vmem:[%s6] sm:$0x1]
  %v1318 = vlaneseq
  %v1319 = vshrl.u32 %v1318, 7
  %v1320 = vsub.s32 0, %v1319
  %v1321 = vrot.slane %v1316, %v1320
  %v1323 = vmul.f32 %v1313, %v1321
  %vm1324 = vcmask 58368
  %v1325 = vsel %vm1324, %v1323, 0.0
  %1326 = vadd.xlane.f32.xlu0 %v1325
  %v1327 = vpop.xlane.xlu0 %1326
  %v1328 = vld [vmem:[#allocation2] sm:$0x1]
  %v1330 = vlaneseq
  %v1331 = vshrl.u32 %v1330, 7
  %v1332 = vsub.s32 0, %v1331
  %v1333 = vrot.slane %v1328, %v1332
  %v1335 = vadd.f32 %v1327, %v1333
  %v1336 = vxor.u32 %v1335, 2147483648
  %v1337 = vmul.f32 %v1336, 1.442695
  %v1338 = vpow.pop %v1337
  %v1339 = vadd.f32 %v1338, 1.0
  %v1340 = vrcp.pop %v1339
  %v1341 = vmul.f32 1.0, %v1340
  %vm1342 = vcmask 1024
  %1343 = vst.msk [vmem:[%s8] sm:$0x3] %vm1342, %v1341
  // Predicated region
  $region34: #{eye_classifier_forward.7} parent=0 // pred_check
    _
  $region35: #{eye_classifier_forward.7} parent=0 // pred_check_branch
    %1345 = sbr.rel (0) target = $region37
  $region36: #{eye_classifier_forward.7} parent=0 // pred_region
    _
  $region37: #{eye_classifier_forward.7} parent=0 // pred_fallthru
    _
  // Predicated region
  $region38: #{eye_classifier_forward.7} parent=0 // pred_check
    _
  $region39: #{eye_classifier_forward.7} parent=0 // pred_check_branch
    %1347 = sbr.rel (0) target = $region41
  $region40: #{eye_classifier_forward.7} parent=0 // pred_region
    _
  $region41: #{eye_classifier_forward.7} parent=0 // pred_fallthru
    _

</llo_original>
